<compile_context>
chip_gen: v7x
topology: tpu7x:2x2x1
jax: 0.10.0
libtpu: 0.0.40
codegen_flags: <defaults>
</compile_context>

<pallas_src>
import functools

import jax
import jax.numpy as jnp
from jax.experimental import pallas as pl
from jax.experimental.pallas import tpu as pltpu


def _round_up(n, m):
    return ((n + m - 1) // m) * m


def _gblock_kernel(x_ref, w1_ref, b1_ref, gamma_ref, beta_ref, ind_ref, w2_ref,
                   b2_ref, o_ref, *, t_real, inv_count, eps, slope):
    # x_ref:  (1, Tp, Cin_p) bf16     w1_ref: (3, Cin_p, Mp) bf16
    # b1/gamma/beta: (1, Mp) f32      ind_ref: (Mp, Gp) f32 channel->group indicator
    # w2_ref: (3, Mp, Cout_p) bf16    b2_ref: (1, Cout_p) f32
    # o_ref:  (1, Tp, Cout_p) bf16
    f32 = jnp.float32
    x = x_ref[0]                                          # (Tp, Cin_p) bf16
    tp = x.shape[0]
    row = jax.lax.broadcasted_iota(jnp.int32, (tp, 1), 0)

    def conv3(act_bf, w_ref, bias):
        # y[t] = act[t-1] @ w[0] + act[t] @ w[1] + act[t+1] @ w[2] + bias, zero-padded in time.
        # Unshifted bf16 activations feed the MXU; the +/-1 shifts are applied to the f32
        # partial products with XLU rolls + boundary masks (no per-tap casts, no staging copies).
        p0 = jnp.dot(act_bf, w_ref[0], preferred_element_type=f32)
        p1 = jnp.dot(act_bf, w_ref[1], preferred_element_type=f32)
        p2 = jnp.dot(act_bf, w_ref[2], preferred_element_type=f32)
        prev = jnp.where(row > 0, pltpu.roll(p0, shift=1, axis=0), 0.0)
        nxt = jnp.where(row < t_real - 1, pltpu.roll(p2, shift=tp - 1, axis=0), 0.0)
        return prev + p1 + nxt + bias

    # ---- Conv1d #1 ----
    h = conv3(x, w1_ref, b1_ref[...])                     # (Tp, Mp) f32

    if t_real != tp:                                      # keep padded time rows out of the stats
        h = jnp.where(row < t_real, h, 0.0)

    # ---- GroupNorm (two-pass f32 stats; reductions & broadcasts as tiny MXU matmuls) ----
    ones_row = jnp.ones((1, tp), f32)
    ind = ind_ref[...]                                    # (Mp, Gp)
    colsum = jnp.dot(ones_row, h, preferred_element_type=f32)                 # (1, Mp)
    mean_g = jnp.dot(colsum, ind, preferred_element_type=f32) * inv_count     # (1, Gp)

    # Broadcast group stats back to channels: contract against ind's group axis
    # (multiply by ind^T without materializing the transpose).
    def bcast(v):
        return jax.lax.dot_general(v, ind, (((1,), (1,)), ((), ())),
                                   preferred_element_type=f32)                # (1, Mp)

    mean_c = bcast(mean_g)
    hc = h - mean_c
    hc_stat = hc if t_real == tp else jnp.where(row < t_real, hc, 0.0)
    colsq = jnp.dot(ones_row, hc_stat * hc_stat, preferred_element_type=f32)  # (1, Mp)
    var_g = jnp.dot(colsq, ind, preferred_element_type=f32) * inv_count       # (1, Gp)
    rstd_c = bcast(jax.lax.rsqrt(var_g + eps))                                # (1, Mp)

    hn = hc * (rstd_c * gamma_ref[...]) + beta_ref[...]
    a = jnp.maximum(hn, slope * hn)                       # LeakyReLU (slope < 1)

    # ---- Conv1d #2 (single bf16 cast of the activations) ----
    y = conv3(a.astype(jnp.bfloat16), w2_ref, b2_ref[...])                    # (Tp, Cout_p) f32

    o_ref[0] = y.astype(o_ref.dtype)


def _vmem_capacity_bytes():
    try:
        cap = getattr(pltpu.get_tpu_info(), "vmem_capacity_bytes", None)
        if cap:
            return int(cap)
    except Exception:
        pass
    return 64 * 1024 * 1024      # per-TensorCore capacity of the most restrictive target (v7x)


def gblock_forward(x_nct, w1, b1, gamma, beta, w2, b2, *, num_groups, eps=1e-5, slope=0.01):
    """x_nct: (B, Cin, T) NCW like PyTorch.  w1: (M, Cin, 3), w2: (Cout, M, 3)."""
    B, Cin, T = x_nct.shape
    M = w1.shape[0]
    Cout = w2.shape[0]
    cg = M // num_groups

    # Lane-dense padding: channels / groups to multiples of 128, time to a multiple of 8.
    Cin_p = _round_up(Cin, 128)
    Mp = _round_up(M, 128)
    Cout_p = _round_up(Cout, 128)
    Gp = _round_up(num_groups, 128)
    Tp = _round_up(T, 8)

    # Activations travel HBM<->VMEM in bf16 (they are only ever consumed as bf16 MXU operands).
    x = jnp.transpose(x_nct, (0, 2, 1))                   # (B, T, Cin)
    x = jnp.pad(x, ((0, 0), (0, Tp - T), (0, Cin_p - Cin))).astype(jnp.bfloat16)

    w1k = jnp.transpose(w1, (2, 1, 0))                    # (3, Cin, M) [tap, in, out]
    w1k = jnp.pad(w1k, ((0, 0), (0, Cin_p - Cin), (0, Mp - M))).astype(jnp.bfloat16)
    w2k = jnp.transpose(w2, (2, 1, 0))                    # (3, M, Cout)
    w2k = jnp.pad(w2k, ((0, 0), (0, Mp - M), (0, Cout_p - Cout))).astype(jnp.bfloat16)

    b1r = jnp.pad(b1, (0, Mp - M)).reshape(1, Mp).astype(jnp.float32)
    gr = jnp.pad(gamma, (0, Mp - M)).reshape(1, Mp).astype(jnp.float32)
    br = jnp.pad(beta, (0, Mp - M)).reshape(1, Mp).astype(jnp.float32)
    b2r = jnp.pad(b2, (0, Cout_p - Cout)).reshape(1, Cout_p).astype(jnp.float32)

    # Static channel->group indicator (padded channels / groups map to zero rows / cols).
    ch = jnp.arange(Mp)
    grp = jnp.arange(Gp)
    ind = ((ch[:, None] < M)
           & ((ch[:, None] // cg) == grp[None, :])
           & (grp[None, :] < num_groups)).astype(jnp.float32)          # (Mp, Gp)

    kernel = functools.partial(
        _gblock_kernel, t_real=T, inv_count=1.0 / float(T * cg), eps=eps, slope=slope)

    # Generation-aware VMEM limit: double-buffered block bytes + f32 temporaries, clamped to
    # ~60% of the queried per-core VMEM capacity so compiler scratch/spill has headroom.
    block_bytes = 2 * (Tp * Cin_p * 2 + 3 * Cin_p * Mp * 2 + 3 * Mp * Cout_p * 2
                       + 3 * Mp * 4 + Mp * Gp * 4 + Cout_p * 4 + Tp * Cout_p * 2)
    temp_bytes = 12 * Tp * max(Mp, Cout_p) * 4
    vmem_limit = max(16 << 20,
                     min(block_bytes + temp_bytes + (4 << 20),
                         (_vmem_capacity_bytes() * 3) // 5))

    out = pl.pallas_call(
        kernel,
        out_shape=jax.ShapeDtypeStruct((B, Tp, Cout_p), jnp.bfloat16),
        grid=(B,),
        in_specs=[
            pl.BlockSpec((1, Tp, Cin_p), lambda b: (b, 0, 0)),
            # Grid-invariant operands below (constant index_map; see Buffered(1) TODO above).
            pl.BlockSpec((3, Cin_p, Mp), lambda b: (0, 0, 0)),
            pl.BlockSpec((1, Mp), lambda b: (0, 0)),
            pl.BlockSpec((1, Mp), lambda b: (0, 0)),
            pl.BlockSpec((1, Mp), lambda b: (0, 0)),
            pl.BlockSpec((Mp, Gp), lambda b: (0, 0)),
            pl.BlockSpec((3, Mp, Cout_p), lambda b: (0, 0, 0)),
            pl.BlockSpec((1, Cout_p), lambda b: (0, 0)),
        ],
        out_specs=pl.BlockSpec((1, Tp, Cout_p), lambda b: (b, 0, 0)),
        compiler_params=pltpu.CompilerParams(
            dimension_semantics=("parallel",),
            vmem_limit_bytes=int(vmem_limit)),
    )(x, w1k, b1r, gr, br, ind, w2k, b2r)

    out = out[:, :T, :Cout]                               # strip padding
    return jnp.transpose(out, (0, 2, 1)).astype(x_nct.dtype)   # (B, Cout, T)


def _reference(x_nct, w1, b1, gamma, beta, w2, b2, num_groups, eps=1e-5, slope=0.01):
    """Pure-JAX f32 reference mirroring the PyTorch module (NCW)."""
    def conv1d(x, w, b):                                  # x: (B, Cin, T), w: (Cout, Cin, 3)
        xt = jnp.transpose(x, (0, 2, 1))                  # (B, T, Cin)
        wt = jnp.transpose(w, (2, 1, 0))                  # (3, Cin, Cout)
        B, T, Cin = xt.shape
        xp = jnp.pad(xt, ((0, 0), (1, 1), (0, 0)))
        y = (jnp.einsum('btc,cd->btd', xp[:, 0:T], wt[0])
             + jnp.einsum('btc,cd->btd', xp[:, 1:T + 1], wt[1])
             + jnp.einsum('btc,cd->btd', xp[:, 2:T + 2], wt[2]) + b)
        return jnp.transpose(y, (0, 2, 1))                # (B, Cout, T)

    h = conv1d(x_nct, w1, b1)                             # (B, M, T)
    B, M, T = h.shape
    hg = h.reshape(B, num_groups, M // num_groups, T)
    mean = jnp.mean(hg, axis=(2, 3), keepdims=True)
    var = jnp.mean((hg - mean) ** 2, axis=(2, 3), keepdims=True)
    hn = ((hg - mean) / jnp.sqrt(var + eps)).reshape(B, M, T)
    hn = hn * gamma[None, :, None] + beta[None, :, None]
    a = jnp.where(hn > 0, hn, slope * hn)
    return conv1d(a, w2, b2)


if __name__ == "__main__":
    # Small shapes consistent with the module.
    B, input_dim, output_dim, middle_dim, num_groups, T = 2, 4, 4, 8, 2, 16

    key = jax.random.PRNGKey(0)
    k = jax.random.split(key, 6)
    x = jax.random.normal(k[0], (B, input_dim, T), dtype=jnp.float32)
    w1 = jax.random.normal(k[1], (middle_dim, input_dim, 3), dtype=jnp.float32) * 0.2
    b1 = jax.random.normal(k[2], (middle_dim,), dtype=jnp.float32) * 0.1
    gamma = jnp.ones((middle_dim,), dtype=jnp.float32)    # GroupNorm affine init
    beta = jnp.zeros((middle_dim,), dtype=jnp.float32)
    w2 = jax.random.normal(k[3], (output_dim, middle_dim, 3), dtype=jnp.float32) * 0.2
    b2 = jax.random.normal(k[4], (output_dim,), dtype=jnp.float32) * 0.1

    out = gblock_forward(x, w1, b1, gamma, beta, w2, b2, num_groups=num_groups)
    out = jax.block_until_ready(out)

    ref = _reference(x, w1, b1, gamma, beta, w2, b2, num_groups)
    assert out.shape == (B, output_dim, T)
    # Tolerance sized for the deliberate bf16 MXU operands / bf16 output (f32 accumulation)
    # versus the all-f32 reference.
    assert jnp.allclose(out, ref, atol=7.5e-2, rtol=5e-2), "mismatch vs reference"

    print("KERNEL_OK")
</pallas_src>

<mosaic_0001>
module attributes {stable_mosaic.version = 11 : i64} {
  func.func @_gblock_kernel(%arg0: i32, %arg1: memref<1x16x128xbf16, #tpu.memory_space<vmem>>, %arg2: memref<3x128x128xbf16, #tpu.memory_space<vmem>>, %arg3: memref<1x128xf32, #tpu.memory_space<vmem>>, %arg4: memref<1x128xf32, #tpu.memory_space<vmem>>, %arg5: memref<1x128xf32, #tpu.memory_space<vmem>>, %arg6: memref<128x128xf32, #tpu.memory_space<vmem>>, %arg7: memref<3x128x128xbf16, #tpu.memory_space<vmem>>, %arg8: memref<1x128xf32, #tpu.memory_space<vmem>>, %arg9: memref<1x16x128xbf16, #tpu.memory_space<vmem>>) attributes {dimension_semantics = [#tpu.dimension_semantics<parallel>], iteration_bounds = array<i64: 2>, scalar_prefetch = 0 : i64, scratch_operands = 0 : i64, tpu.core_type = #tpu.core_type<tc>, window_params = [{transform_indices = @transform_0, window_bounds = array<i64: 1, 16, 128>}, {pipeline_mode = #tpu.pipeline_mode<synchronous>, transform_indices = @transform_1, window_bounds = array<i64: 3, 128, 128>}, {pipeline_mode = #tpu.pipeline_mode<synchronous>, transform_indices = @transform_2, window_bounds = array<i64: 1, 128>}, {pipeline_mode = #tpu.pipeline_mode<synchronous>, transform_indices = @transform_3, window_bounds = array<i64: 1, 128>}, {pipeline_mode = #tpu.pipeline_mode<synchronous>, transform_indices = @transform_4, window_bounds = array<i64: 1, 128>}, {pipeline_mode = #tpu.pipeline_mode<synchronous>, transform_indices = @transform_5, window_bounds = array<i64: 128, 128>}, {pipeline_mode = #tpu.pipeline_mode<synchronous>, transform_indices = @transform_6, window_bounds = array<i64: 3, 128, 128>}, {pipeline_mode = #tpu.pipeline_mode<synchronous>, transform_indices = @transform_7, window_bounds = array<i64: 1, 128>}, {transform_indices = @transform_8, window_bounds = array<i64: 1, 16, 128>}]} {
    %c0 = arith.constant 0 : index
    %c0_0 = arith.constant 0 : index
    %c0_1 = arith.constant 0 : index
    %0 = vector.load %arg1[%c0, %c0_0, %c0_1] : memref<1x16x128xbf16, #tpu.memory_space<vmem>>, vector<1x16x128xbf16>
    %1 = vector.shape_cast %0 : vector<1x16x128xbf16> to vector<16x128xbf16>
    %2 = tpu.iota {dimensions = array<i32: 0>} : vector<16x1xi32>
    %c0_2 = arith.constant 0 : index
    %c0_3 = arith.constant 0 : index
    %3 = vector.load %arg3[%c0_2, %c0_3] : memref<1x128xf32, #tpu.memory_space<vmem>>, vector<1x128xf32>
    %c0_4 = arith.constant 0 : index
    %c0_5 = arith.constant 0 : index
    %c0_6 = arith.constant 0 : index
    %4 = vector.load %arg2[%c0_4, %c0_5, %c0_6] : memref<3x128x128xbf16, #tpu.memory_space<vmem>>, vector<1x128x128xbf16>
    %5 = vector.shape_cast %4 : vector<1x128x128xbf16> to vector<128x128xbf16>
    %cst = arith.constant dense<0.000000e+00> : vector<16x128xf32>
    %6 = tpu.matmul %1, %5, %cst {dimension_numbers = #tpu.dot_dimension_numbers<[1], [0], [0], [1], [0, 0, 1, 1], [], []>} : vector<16x128xbf16>, vector<128x128xbf16>, vector<16x128xf32> -> vector<16x128xf32>
    %c1 = arith.constant 1 : index
    %c0_7 = arith.constant 0 : index
    %c0_8 = arith.constant 0 : index
    %7 = vector.load %arg2[%c1, %c0_7, %c0_8] : memref<3x128x128xbf16, #tpu.memory_space<vmem>>, vector<1x128x128xbf16>
    %8 = vector.shape_cast %7 : vector<1x128x128xbf16> to vector<128x128xbf16>
    %cst_9 = arith.constant dense<0.000000e+00> : vector<16x128xf32>
    %9 = tpu.matmul %1, %8, %cst_9 {dimension_numbers = #tpu.dot_dimension_numbers<[1], [0], [0], [1], [0, 0, 1, 1], [], []>} : vector<16x128xbf16>, vector<128x128xbf16>, vector<16x128xf32> -> vector<16x128xf32>
    %c2 = arith.constant 2 : index
    %c0_10 = arith.constant 0 : index
    %c0_11 = arith.constant 0 : index
    %10 = vector.load %arg2[%c2, %c0_10, %c0_11] : memref<3x128x128xbf16, #tpu.memory_space<vmem>>, vector<1x128x128xbf16>
    %11 = vector.shape_cast %10 : vector<1x128x128xbf16> to vector<128x128xbf16>
    %cst_12 = arith.constant dense<0.000000e+00> : vector<16x128xf32>
    %12 = tpu.matmul %1, %11, %cst_12 {dimension_numbers = #tpu.dot_dimension_numbers<[1], [0], [0], [1], [0, 0, 1, 1], [], []>} : vector<16x128xbf16>, vector<128x128xbf16>, vector<16x128xf32> -> vector<16x128xf32>
    %c0_i32 = arith.constant 0 : i32
    %13 = vector.broadcast %c0_i32 : i32 to vector<16x1xi32>
    %14 = arith.cmpi sgt, %2, %13 : vector<16x1xi32>
    %c1_i32 = arith.constant 1 : i32
    %15 = tpu.dynamic_rotate %6 by %c1_i32 dim 0 : vector<16x128xf32>, i32 -> vector<16x128xf32>
    %cst_13 = arith.constant 0.000000e+00 : f32
    %16 = vector.shape_cast %14 : vector<16x1xi1> to vector<16x1xi1>
    %17 = vector.broadcast %16 : vector<16x1xi1> to vector<16x128xi1>
    %18 = vector.broadcast %cst_13 : f32 to vector<16x128xf32>
    %19 = arith.select %17, %15, %18 : vector<16x128xi1>, vector<16x128xf32>
    %c15_i32 = arith.constant 15 : i32
    %20 = vector.broadcast %c15_i32 : i32 to vector<16x1xi32>
    %21 = arith.cmpi slt, %2, %20 : vector<16x1xi32>
    %c15_i32_14 = arith.constant 15 : i32
    %22 = tpu.dynamic_rotate %12 by %c15_i32_14 dim 0 : vector<16x128xf32>, i32 -> vector<16x128xf32>
    %cst_15 = arith.constant 0.000000e+00 : f32
    %23 = vector.shape_cast %21 : vector<16x1xi1> to vector<16x1xi1>
    %24 = vector.broadcast %23 : vector<16x1xi1> to vector<16x128xi1>
    %25 = vector.broadcast %cst_15 : f32 to vector<16x128xf32>
    %26 = arith.select %24, %22, %25 : vector<16x128xi1>, vector<16x128xf32>
    %27 = arith.addf %19, %9 : vector<16x128xf32>
    %28 = arith.addf %27, %26 : vector<16x128xf32>
    %29 = vector.broadcast %3 : vector<1x128xf32> to vector<16x128xf32>
    %30 = arith.addf %28, %29 : vector<16x128xf32>
    %cst_16 = arith.constant 1.000000e+00 : f32
    %31 = vector.broadcast %cst_16 : f32 to vector<1x16xf32>
    %c0_17 = arith.constant 0 : index
    %c0_18 = arith.constant 0 : index
    %32 = vector.load %arg6[%c0_17, %c0_18] : memref<128x128xf32, #tpu.memory_space<vmem>>, vector<128x128xf32>
    %cst_19 = arith.constant dense<0.000000e+00> : vector<1x128xf32>
    %33 = tpu.matmul %31, %30, %cst_19 {dimension_numbers = #tpu.dot_dimension_numbers<[1], [0], [0], [1], [0, 0, 1, 1], [], []>} : vector<1x16xf32>, vector<16x128xf32>, vector<1x128xf32> -> vector<1x128xf32>
    %cst_20 = arith.constant dense<0.000000e+00> : vector<1x128xf32>
    %34 = tpu.matmul %33, %32, %cst_20 {dimension_numbers = #tpu.dot_dimension_numbers<[1], [0], [0], [1], [0, 0, 1, 1], [], []>} : vector<1x128xf32>, vector<128x128xf32>, vector<1x128xf32> -> vector<1x128xf32>
    %cst_21 = arith.constant 1.562500e-02 : f32
    %35 = vector.broadcast %cst_21 : f32 to vector<1x128xf32>
    %36 = arith.mulf %34, %35 : vector<1x128xf32>
    %cst_22 = arith.constant dense<0.000000e+00> : vector<1x128xf32>
    %37 = tpu.matmul %36, %32, %cst_22 {dimension_numbers = #tpu.dot_dimension_numbers<[1], [1], [0], [0], [0, 0, 1, 0], [], []>} : vector<1x128xf32>, vector<128x128xf32>, vector<1x128xf32> -> vector<1x128xf32>
    %38 = vector.broadcast %37 : vector<1x128xf32> to vector<16x128xf32>
    %39 = arith.subf %30, %38 : vector<16x128xf32>
    %40 = arith.mulf %39, %39 : vector<16x128xf32>
    %cst_23 = arith.constant dense<0.000000e+00> : vector<1x128xf32>
    %41 = tpu.matmul %31, %40, %cst_23 {dimension_numbers = #tpu.dot_dimension_numbers<[1], [0], [0], [1], [0, 0, 1, 1], [], []>} : vector<1x16xf32>, vector<16x128xf32>, vector<1x128xf32> -> vector<1x128xf32>
    %cst_24 = arith.constant dense<0.000000e+00> : vector<1x128xf32>
    %42 = tpu.matmul %41, %32, %cst_24 {dimension_numbers = #tpu.dot_dimension_numbers<[1], [0], [0], [1], [0, 0, 1, 1], [], []>} : vector<1x128xf32>, vector<128x128xf32>, vector<1x128xf32> -> vector<1x128xf32>
    %cst_25 = arith.constant 1.562500e-02 : f32
    %43 = vector.broadcast %cst_25 : f32 to vector<1x128xf32>
    %44 = arith.mulf %42, %43 : vector<1x128xf32>
    %cst_26 = arith.constant 9.99999974E-6 : f32
    %45 = vector.broadcast %cst_26 : f32 to vector<1x128xf32>
    %46 = arith.addf %44, %45 : vector<1x128xf32>
    %47 = math.rsqrt %46 : vector<1x128xf32>
    %cst_27 = arith.constant dense<0.000000e+00> : vector<1x128xf32>
    %48 = tpu.matmul %47, %32, %cst_27 {dimension_numbers = #tpu.dot_dimension_numbers<[1], [1], [0], [0], [0, 0, 1, 0], [], []>} : vector<1x128xf32>, vector<128x128xf32>, vector<1x128xf32> -> vector<1x128xf32>
    %c0_28 = arith.constant 0 : index
    %c0_29 = arith.constant 0 : index
    %49 = vector.load %arg4[%c0_28, %c0_29] : memref<1x128xf32, #tpu.memory_space<vmem>>, vector<1x128xf32>
    %50 = arith.mulf %48, %49 : vector<1x128xf32>
    %51 = vector.broadcast %50 : vector<1x128xf32> to vector<16x128xf32>
    %52 = arith.mulf %39, %51 : vector<16x128xf32>
    %c0_30 = arith.constant 0 : index
    %c0_31 = arith.constant 0 : index
    %53 = vector.load %arg5[%c0_30, %c0_31] : memref<1x128xf32, #tpu.memory_space<vmem>>, vector<1x128xf32>
    %54 = vector.broadcast %53 : vector<1x128xf32> to vector<16x128xf32>
    %55 = arith.addf %52, %54 : vector<16x128xf32>
    %cst_32 = arith.constant 0.00999999977 : f32
    %56 = vector.broadcast %cst_32 : f32 to vector<16x128xf32>
    %57 = arith.mulf %56, %55 : vector<16x128xf32>
    %58 = arith.maximumf %55, %57 : vector<16x128xf32>
    %59 = arith.truncf %58 : vector<16x128xf32> to vector<16x128xbf16>
    %c0_33 = arith.constant 0 : index
    %c0_34 = arith.constant 0 : index
    %60 = vector.load %arg8[%c0_33, %c0_34] : memref<1x128xf32, #tpu.memory_space<vmem>>, vector<1x128xf32>
    %c0_35 = arith.constant 0 : index
    %c0_36 = arith.constant 0 : index
    %c0_37 = arith.constant 0 : index
    %61 = vector.load %arg7[%c0_35, %c0_36, %c0_37] : memref<3x128x128xbf16, #tpu.memory_space<vmem>>, vector<1x128x128xbf16>
    %62 = vector.shape_cast %61 : vector<1x128x128xbf16> to vector<128x128xbf16>
    %cst_38 = arith.constant dense<0.000000e+00> : vector<16x128xf32>
    %63 = tpu.matmul %59, %62, %cst_38 {dimension_numbers = #tpu.dot_dimension_numbers<[1], [0], [0], [1], [0, 0, 1, 1], [], []>} : vector<16x128xbf16>, vector<128x128xbf16>, vector<16x128xf32> -> vector<16x128xf32>
    %c1_39 = arith.constant 1 : index
    %c0_40 = arith.constant 0 : index
    %c0_41 = arith.constant 0 : index
    %64 = vector.load %arg7[%c1_39, %c0_40, %c0_41] : memref<3x128x128xbf16, #tpu.memory_space<vmem>>, vector<1x128x128xbf16>
    %65 = vector.shape_cast %64 : vector<1x128x128xbf16> to vector<128x128xbf16>
    %cst_42 = arith.constant dense<0.000000e+00> : vector<16x128xf32>
    %66 = tpu.matmul %59, %65, %cst_42 {dimension_numbers = #tpu.dot_dimension_numbers<[1], [0], [0], [1], [0, 0, 1, 1], [], []>} : vector<16x128xbf16>, vector<128x128xbf16>, vector<16x128xf32> -> vector<16x128xf32>
    %c2_43 = arith.constant 2 : index
    %c0_44 = arith.constant 0 : index
    %c0_45 = arith.constant 0 : index
    %67 = vector.load %arg7[%c2_43, %c0_44, %c0_45] : memref<3x128x128xbf16, #tpu.memory_space<vmem>>, vector<1x128x128xbf16>
    %68 = vector.shape_cast %67 : vector<1x128x128xbf16> to vector<128x128xbf16>
    %cst_46 = arith.constant dense<0.000000e+00> : vector<16x128xf32>
    %69 = tpu.matmul %59, %68, %cst_46 {dimension_numbers = #tpu.dot_dimension_numbers<[1], [0], [0], [1], [0, 0, 1, 1], [], []>} : vector<16x128xbf16>, vector<128x128xbf16>, vector<16x128xf32> -> vector<16x128xf32>
    %c0_i32_47 = arith.constant 0 : i32
    %70 = vector.broadcast %c0_i32_47 : i32 to vector<16x1xi32>
    %71 = arith.cmpi sgt, %2, %70 : vector<16x1xi32>
    %c1_i32_48 = arith.constant 1 : i32
    %72 = tpu.dynamic_rotate %63 by %c1_i32_48 dim 0 : vector<16x128xf32>, i32 -> vector<16x128xf32>
    %cst_49 = arith.constant 0.000000e+00 : f32
    %73 = vector.shape_cast %71 : vector<16x1xi1> to vector<16x1xi1>
    %74 = vector.broadcast %73 : vector<16x1xi1> to vector<16x128xi1>
    %75 = vector.broadcast %cst_49 : f32 to vector<16x128xf32>
    %76 = arith.select %74, %72, %75 : vector<16x128xi1>, vector<16x128xf32>
    %c15_i32_50 = arith.constant 15 : i32
    %77 = vector.broadcast %c15_i32_50 : i32 to vector<16x1xi32>
    %78 = arith.cmpi slt, %2, %77 : vector<16x1xi32>
    %c15_i32_51 = arith.constant 15 : i32
    %79 = tpu.dynamic_rotate %69 by %c15_i32_51 dim 0 : vector<16x128xf32>, i32 -> vector<16x128xf32>
    %cst_52 = arith.constant 0.000000e+00 : f32
    %80 = vector.shape_cast %78 : vector<16x1xi1> to vector<16x1xi1>
    %81 = vector.broadcast %80 : vector<16x1xi1> to vector<16x128xi1>
    %82 = vector.broadcast %cst_52 : f32 to vector<16x128xf32>
    %83 = arith.select %81, %79, %82 : vector<16x128xi1>, vector<16x128xf32>
    %84 = arith.addf %76, %66 : vector<16x128xf32>
    %85 = arith.addf %84, %83 : vector<16x128xf32>
    %86 = vector.broadcast %60 : vector<1x128xf32> to vector<16x128xf32>
    %87 = arith.addf %85, %86 : vector<16x128xf32>
    %88 = arith.truncf %87 : vector<16x128xf32> to vector<16x128xbf16>
    %c0_53 = arith.constant 0 : index
    %c0_54 = arith.constant 0 : index
    %c0_55 = arith.constant 0 : index
    %89 = vector.load %arg9[%c0_53, %c0_54, %c0_55] : memref<1x16x128xbf16, #tpu.memory_space<vmem>>, vector<1x16x128xbf16>
    %90 = vector.shape_cast %89 : vector<1x16x128xbf16> to vector<16x128xbf16>
    %91 = vector.shape_cast %88 : vector<16x128xbf16> to vector<1x16x128xbf16>
    tpu.vector_store %arg9[%c0_53, %c0_54, %c0_55], %91 {strides = array<i32>} : memref<1x16x128xbf16, #tpu.memory_space<vmem>>, vector<1x16x128xbf16>,
    return
  }
  func.func @transform_0(%arg0: i32) -> (i32, i32, i32) {
    %c0_i32 = arith.constant 0 : i32
    %c0_i32_0 = arith.constant 0 : i32
    %c0_i32_1 = arith.constant 0 : i32
    return %arg0, %c0_i32, %c0_i32_0 : i32, i32, i32
  }
  func.func @transform_1(%arg0: i32) -> (i32, i32, i32) {
    %c0_i32 = arith.constant 0 : i32
    %c0_i32_0 = arith.constant 0 : i32
    %c0_i32_1 = arith.constant 0 : i32
    %c0_i32_2 = arith.constant 0 : i32
    return %c0_i32, %c0_i32_0, %c0_i32_1 : i32, i32, i32
  }
  func.func @transform_2(%arg0: i32) -> (i32, i32) {
    %c0_i32 = arith.constant 0 : i32
    %c0_i32_0 = arith.constant 0 : i32
    %c0_i32_1 = arith.constant 0 : i32
    return %c0_i32, %c0_i32_0 : i32, i32
  }
  func.func @transform_3(%arg0: i32) -> (i32, i32) {
    %c0_i32 = arith.constant 0 : i32
    %c0_i32_0 = arith.constant 0 : i32
    %c0_i32_1 = arith.constant 0 : i32
    return %c0_i32, %c0_i32_0 : i32, i32
  }
  func.func @transform_4(%arg0: i32) -> (i32, i32) {
    %c0_i32 = arith.constant 0 : i32
    %c0_i32_0 = arith.constant 0 : i32
    %c0_i32_1 = arith.constant 0 : i32
    return %c0_i32, %c0_i32_0 : i32, i32
  }
  func.func @transform_5(%arg0: i32) -> (i32, i32) {
    %c0_i32 = arith.constant 0 : i32
    %c0_i32_0 = arith.constant 0 : i32
    %c0_i32_1 = arith.constant 0 : i32
    return %c0_i32, %c0_i32_0 : i32, i32
  }
  func.func @transform_6(%arg0: i32) -> (i32, i32, i32) {
    %c0_i32 = arith.constant 0 : i32
    %c0_i32_0 = arith.constant 0 : i32
    %c0_i32_1 = arith.constant 0 : i32
    %c0_i32_2 = arith.constant 0 : i32
    return %c0_i32, %c0_i32_0, %c0_i32_1 : i32, i32, i32
  }
  func.func @transform_7(%arg0: i32) -> (i32, i32) {
    %c0_i32 = arith.constant 0 : i32
    %c0_i32_0 = arith.constant 0 : i32
    %c0_i32_1 = arith.constant 0 : i32
    return %c0_i32, %c0_i32_0 : i32, i32
  }
  func.func @transform_8(%arg0: i32) -> (i32, i32, i32) {
    %c0_i32 = arith.constant 0 : i32
    %c0_i32_0 = arith.constant 0 : i32
    %c0_i32_1 = arith.constant 0 : i32
    return %arg0, %c0_i32, %c0_i32_0 : i32, i32, i32
  }
}

</mosaic_0001>

<llo_original>
// kernel: tpu_custom_call.1
$region0: #{tpu_custom_call.1}
  #allocation0 [shape = 'u32[]', space=smem, size = 0x4, offset = 0x4, fixed_abs, tag = 'smem constant byte address 0x4 - core index']
  #allocation1 [shape = 'u32[144,128]{1,0:T(1,128)}', space=vmem, size = 0x12000, scoped, tag = 'internal scratch']
  %s0 = inlined_call_operand.hbm [shape: bf16[2,16,128], index: 0, kind: input, shape index: {}]
  %s1 = inlined_call_operand.hbm [shape: bf16[3,128,128], index: 1, kind: input, shape index: {}]
  %s2 = inlined_call_operand.vmem [shape: f32[1,128], index: 2, kind: input, shape index: {}]
  %s3 = inlined_call_operand.vmem [shape: f32[1,128], index: 3, kind: input, shape index: {}]
  %s4 = inlined_call_operand.vmem [shape: f32[1,128], index: 4, kind: input, shape index: {}]
  %s5 = inlined_call_operand.hbm [shape: f32[128,128], index: 5, kind: input, shape index: {}]
  %s6 = inlined_call_operand.hbm [shape: bf16[3,128,128], index: 6, kind: input, shape index: {}]
  %s7 = inlined_call_operand.vmem [shape: f32[1,128], index: 7, kind: input, shape index: {}]
  %s8 = inlined_call_operand.hbm [shape: bf16[2,16,128], index: 8, kind: output, shape index: {}]
  %s9 = sld [smem:[#allocation0]]
  $region81: #{tpu_custom_call.1} parent=0
    _
  %s11 = ssub.s32 1, %s9
  %s12 = scalar_select 0, %s11, %s9
  $region1: #{tpu_custom_call.1} parent=0
    #allocation2 [shape = 'u8[8192]{0}', space=vmem, size = 0x2000, scoped, tag = 'input window, operand 0']
    #allocation3 [shape = 's32[2]{0}', space=sflag, size = 0x8, scoped, tag = 'scoped memory for tpu_custom_call.1']
    #allocation4 [shape = 's32[2]{0}', space=sflag, size = 0x8, scoped, tag = 'scoped memory for tpu_custom_call.1']
    #allocation5 [shape = 'u8[98304]{0}', space=vmem, size = 0x18000, scoped, tag = 'input window, operand 1, single buffered']
    #allocation6 [shape = 's32[1]{0}', space=sflag, size = 0x4, scoped, tag = 'scoped memory for tpu_custom_call.1']
    #allocation7 [shape = 'u8[65536]{0}', space=vmem, size = 0x10000, scoped, tag = 'input window, operand 5, single buffered']
    #allocation8 [shape = 'u8[98304]{0}', space=vmem, size = 0x18000, scoped, tag = 'input window, operand 6, single buffered']
    #allocation9 [shape = 's32[1]{0}', space=sflag, size = 0x4, scoped, tag = 'scoped memory for tpu_custom_call.1']
    #allocation10 [shape = 'u8[8192]{0}', space=vmem, size = 0x2000, scoped, tag = 'output window, operand 0']
    %13 = vsyncpa [#allocation3], 0
    %s14 = scalar_lea.sflag [#allocation3], 1
    %15 = vsyncpa %s14, 0
    %16 = vsyncpa [#allocation6], 0
    %17 = vsyncpa [#allocation9], 0
    %18 = vsyncpa [#allocation4], 0
    %s19 = scalar_lea.sflag [#allocation4], 1
    %20 = vsyncpa %s19, 0
    loop: start=0, step=1, limit=4
    $region2: #{tpu_custom_call.1} parent=1 // loop_pre_header
      _
    $region3: #{tpu_custom_call.1} parent=1 // loop_header
      %s22 = sphi 0, %s26
      %p23 = scmp.ge.s32.totalorder %s22, 4
      %s32 = sphi 0, %s34
      %s35 = sphi 0, %s32
      %s36 = sphi 0, %s35
      %s52 = sphi 0, %s36
      %s56 = sphi 0, %s56
      %s58 = sphi 0, %s56
      %s59 = sphi 0, %s58
      %s73 = sphi 0, %s59
      %s77 = sphi 0, %s77
      %s79 = sphi 0, %s77
      %s80 = sphi 0, %s79
      %s94 = sphi 0, %s80
      %s98 = sphi 0, %s98
      %s100 = sphi 0, %s98
      %s101 = sphi 0, %s100
      %s115 = sphi 0, %s101
      %s119 = sphi 0, %s119
      %s121 = sphi 0, %s119
      %s122 = sphi 0, %s121
      %s136 = sphi 0, %s122
      %s140 = sphi 0, %s140
      %s142 = sphi 0, %s140
      %s143 = sphi 0, %s142
      %s157 = sphi 0, %s143
      %s161 = sphi 0, %s161
      %s163 = sphi 0, %s161
      %s164 = sphi 0, %s163
      %s178 = sphi 0, %s164
      %s182 = sphi 0, %s182
      %s184 = sphi 0, %s182
      %s185 = sphi 0, %s184
      %s199 = sphi 0, %s185
      %s205 = sphi 0, %s207
      %s208 = sphi 0, %s205
      %s209 = sphi 0, %s208
      %s225 = sphi 0, %s209
    $region4: #{tpu_custom_call.1} parent=1 // loop_header_branch
      %25 = sbr.rel (%p23) target = $region8
    $region5: #{tpu_custom_call.1} parent=1 // loop_body
      %s27 = ssub.s32 %s22, 1
      %s28 = ssub.s32 %s22, 2
      %s29 = sadd.s32 %s22, 1
      %s30 = ssub.s32 %s22, %s29
      %p31 = scmp.eq.s32.totalorder %s30, 0
      %s33 = sadd.s32 %s32, 1
      %s34 = scalar_select %p31, %s32, %s33
      %p37 = pneg %p31
      %p38 = scmp.eq.s32.totalorder %s22, 1
      %p39 = por %p37, %p38
      %p40 = scmp.ne.s32.totalorder %s32, %s35
      %p41 = scmp.eq.s32.totalorder %s22, 0
      %p42 = por %p40, %p41
      %p43 = scmp.ne.s32.totalorder %s32, %s35
      %p44 = scmp.eq.s32.totalorder %s27, 1
      %p45 = por %p43, %p44
      %p46 = scmp.ne.s32.totalorder %s35, %s36
      %p47 = scmp.eq.s32.totalorder %s27, 0
      %p48 = por %p46, %p47
      %p49 = scmp.ne.s32.totalorder %s35, %s36
      %p50 = scmp.eq.s32.totalorder %s28, 1
      %p51 = por %p49, %p50
      %p53 = scmp.ne.s32.totalorder %s36, %s52
      %p54 = scmp.eq.s32.totalorder %s28, 0
      %p55 = por %p53, %p54
      %s57 = sadd.s32 %s56, 1
      %p60 = scmp.eq.s32.totalorder %s22, 1
      %p61 = scmp.ne.s32.totalorder %s56, %s58
      %p62 = scmp.eq.s32.totalorder %s22, 0
      %p63 = por %p61, %p62
      %p64 = scmp.ne.s32.totalorder %s56, %s58
      %p65 = scmp.eq.s32.totalorder %s27, 1
      %p66 = por %p64, %p65
      %p67 = scmp.ne.s32.totalorder %s58, %s59
      %p68 = scmp.eq.s32.totalorder %s27, 0
      %p69 = por %p67, %p68
      %p70 = scmp.ne.s32.totalorder %s58, %s59
      %p71 = scmp.eq.s32.totalorder %s28, 1
      %p72 = por %p70, %p71
      %p74 = scmp.ne.s32.totalorder %s59, %s73
      %p75 = scmp.eq.s32.totalorder %s28, 0
      %p76 = por %p74, %p75
      %s78 = sadd.s32 %s77, 1
      %p81 = scmp.eq.s32.totalorder %s22, 1
      %p82 = scmp.ne.s32.totalorder %s77, %s79
      %p83 = scmp.eq.s32.totalorder %s22, 0
      %p84 = por %p82, %p83
      %p85 = scmp.ne.s32.totalorder %s77, %s79
      %p86 = scmp.eq.s32.totalorder %s27, 1
      %p87 = por %p85, %p86
      %p88 = scmp.ne.s32.totalorder %s79, %s80
      %p89 = scmp.eq.s32.totalorder %s27, 0
      %p90 = por %p88, %p89
      %p91 = scmp.ne.s32.totalorder %s79, %s80
      %p92 = scmp.eq.s32.totalorder %s28, 1
      %p93 = por %p91, %p92
      %p95 = scmp.ne.s32.totalorder %s80, %s94
      %p96 = scmp.eq.s32.totalorder %s28, 0
      %p97 = por %p95, %p96
      %s99 = sadd.s32 %s98, 1
      %p102 = scmp.eq.s32.totalorder %s22, 1
      %p103 = scmp.ne.s32.totalorder %s98, %s100
      %p104 = scmp.eq.s32.totalorder %s22, 0
      %p105 = por %p103, %p104
      %p106 = scmp.ne.s32.totalorder %s98, %s100
      %p107 = scmp.eq.s32.totalorder %s27, 1
      %p108 = por %p106, %p107
      %p109 = scmp.ne.s32.totalorder %s100, %s101
      %p110 = scmp.eq.s32.totalorder %s27, 0
      %p111 = por %p109, %p110
      %p112 = scmp.ne.s32.totalorder %s100, %s101
      %p113 = scmp.eq.s32.totalorder %s28, 1
      %p114 = por %p112, %p113
      %p116 = scmp.ne.s32.totalorder %s101, %s115
      %p117 = scmp.eq.s32.totalorder %s28, 0
      %p118 = por %p116, %p117
      %s120 = sadd.s32 %s119, 1
      %p123 = scmp.eq.s32.totalorder %s22, 1
      %p124 = scmp.ne.s32.totalorder %s119, %s121
      %p125 = scmp.eq.s32.totalorder %s22, 0
      %p126 = por %p124, %p125
      %p127 = scmp.ne.s32.totalorder %s119, %s121
      %p128 = scmp.eq.s32.totalorder %s27, 1
      %p129 = por %p127, %p128
      %p130 = scmp.ne.s32.totalorder %s121, %s122
      %p131 = scmp.eq.s32.totalorder %s27, 0
      %p132 = por %p130, %p131
      %p133 = scmp.ne.s32.totalorder %s121, %s122
      %p134 = scmp.eq.s32.totalorder %s28, 1
      %p135 = por %p133, %p134
      %p137 = scmp.ne.s32.totalorder %s122, %s136
      %p138 = scmp.eq.s32.totalorder %s28, 0
      %p139 = por %p137, %p138
      %s141 = sadd.s32 %s140, 1
      %p144 = scmp.eq.s32.totalorder %s22, 1
      %p145 = scmp.ne.s32.totalorder %s140, %s142
      %p146 = scmp.eq.s32.totalorder %s22, 0
      %p147 = por %p145, %p146
      %p148 = scmp.ne.s32.totalorder %s140, %s142
      %p149 = scmp.eq.s32.totalorder %s27, 1
      %p150 = por %p148, %p149
      %p151 = scmp.ne.s32.totalorder %s142, %s143
      %p152 = scmp.eq.s32.totalorder %s27, 0
      %p153 = por %p151, %p152
      %p154 = scmp.ne.s32.totalorder %s142, %s143
      %p155 = scmp.eq.s32.totalorder %s28, 1
      %p156 = por %p154, %p155
      %p158 = scmp.ne.s32.totalorder %s143, %s157
      %p159 = scmp.eq.s32.totalorder %s28, 0
      %p160 = por %p158, %p159
      %s162 = sadd.s32 %s161, 1
      %p165 = scmp.eq.s32.totalorder %s22, 1
      %p166 = scmp.ne.s32.totalorder %s161, %s163
      %p167 = scmp.eq.s32.totalorder %s22, 0
      %p168 = por %p166, %p167
      %p169 = scmp.ne.s32.totalorder %s161, %s163
      %p170 = scmp.eq.s32.totalorder %s27, 1
      %p171 = por %p169, %p170
      %p172 = scmp.ne.s32.totalorder %s163, %s164
      %p173 = scmp.eq.s32.totalorder %s27, 0
      %p174 = por %p172, %p173
      %p175 = scmp.ne.s32.totalorder %s163, %s164
      %p176 = scmp.eq.s32.totalorder %s28, 1
      %p177 = por %p175, %p176
      %p179 = scmp.ne.s32.totalorder %s164, %s178
      %p180 = scmp.eq.s32.totalorder %s28, 0
      %p181 = por %p179, %p180
      %s183 = sadd.s32 %s182, 1
      %p186 = scmp.eq.s32.totalorder %s22, 1
      %p187 = scmp.ne.s32.totalorder %s182, %s184
      %p188 = scmp.eq.s32.totalorder %s22, 0
      %p189 = por %p187, %p188
      %p190 = scmp.ne.s32.totalorder %s182, %s184
      %p191 = scmp.eq.s32.totalorder %s27, 1
      %p192 = por %p190, %p191
      %p193 = scmp.ne.s32.totalorder %s184, %s185
      %p194 = scmp.eq.s32.totalorder %s27, 0
      %p195 = por %p193, %p194
      %p196 = scmp.ne.s32.totalorder %s184, %s185
      %p197 = scmp.eq.s32.totalorder %s28, 1
      %p198 = por %p196, %p197
      %p200 = scmp.ne.s32.totalorder %s185, %s199
      %p201 = scmp.eq.s32.totalorder %s28, 0
      %p202 = por %p200, %p201
      %s203 = ssub.s32 %s22, %s29
      %p204 = scmp.eq.s32.totalorder %s203, 0
      %s206 = sadd.s32 %s205, 1
      %s207 = scalar_select %p204, %s205, %s206
      %p210 = pneg %p204
      %p211 = scmp.eq.s32.totalorder %s22, 1
      %p212 = por %p210, %p211
      %p213 = scmp.ne.s32.totalorder %s205, %s208
      %p214 = scmp.eq.s32.totalorder %s22, 0
      %p215 = por %p213, %p214
      %p216 = scmp.ne.s32.totalorder %s205, %s208
      %p217 = scmp.eq.s32.totalorder %s27, 1
      %p218 = por %p216, %p217
      %p219 = scmp.ne.s32.totalorder %s208, %s209
      %p220 = scmp.eq.s32.totalorder %s27, 0
      %p221 = por %p219, %p220
      %p222 = scmp.ne.s32.totalorder %s208, %s209
      %p223 = scmp.eq.s32.totalorder %s28, 1
      %p224 = por %p222, %p223
      %p226 = scmp.ne.s32.totalorder %s209, %s225
      %p227 = scmp.eq.s32.totalorder %s28, 0
      %p228 = por %p226, %p227
      %p229 = scmp.le.s32.totalorder 1, %s22
      %p230 = scmp.lt.s32.totalorder %s22, 3
      %p231 = pnand %p229, %p230
      %p232 = pneg %p231
      // Predicated region
      $region9: #{tpu_custom_call.1} parent=5 // pred_check
        _
      $region10: #{tpu_custom_call.1} parent=5 // pred_check_branch
        %234 = sbr.rel (%p231) target = $region12
      $region11: #{tpu_custom_call.1} parent=5 // pred_region
        %s235 = ssub.s32 %s22, 1
        // Predicated region
        $region13: #{tpu_custom_call.1} parent=11 // pred_check
          %p236 = pneg %p69
        $region14: #{tpu_custom_call.1} parent=11 // pred_check_branch
          %238 = sbr.rel (%p236) target = $region16
        $region15: #{tpu_custom_call.1} parent=11 // pred_region
          %s240 = ssub.s32 3072, 3072
          %241 = vsyncadd [#allocation6], %s240
          %s242 = sshll.u32 [#allocation5], 4
          %s243 = int_to_ptr.vmem [resolvable:$true] %s242
          %248 = dma.hbm_to_vmem [thread:$0]  %s1, 3072, %s243, [#allocation6], 64, 64, 4
        $region16: #{tpu_custom_call.1} parent=11 // pred_fallthru
          _
        // Predicated region
        $region17: #{tpu_custom_call.1} parent=11 // pred_check
          %p249 = pneg %p90
        $region18: #{tpu_custom_call.1} parent=11 // pred_check_branch
          %251 = sbr.rel (%p249) target = $region20
        $region19: #{tpu_custom_call.1} parent=11 // pred_region
          _
        $region20: #{tpu_custom_call.1} parent=11 // pred_fallthru
          _
        // Predicated region
        $region21: #{tpu_custom_call.1} parent=11 // pred_check
          %p252 = pneg %p111
        $region22: #{tpu_custom_call.1} parent=11 // pred_check_branch
          %254 = sbr.rel (%p252) target = $region24
        $region23: #{tpu_custom_call.1} parent=11 // pred_region
          _
        $region24: #{tpu_custom_call.1} parent=11 // pred_fallthru
          _
        // Predicated region
        $region25: #{tpu_custom_call.1} parent=11 // pred_check
          %p255 = pneg %p132
        $region26: #{tpu_custom_call.1} parent=11 // pred_check_branch
          %257 = sbr.rel (%p255) target = $region28
        $region27: #{tpu_custom_call.1} parent=11 // pred_region
          _
        $region28: #{tpu_custom_call.1} parent=11 // pred_fallthru
          _
        // Predicated region
        $region29: #{tpu_custom_call.1} parent=11 // pred_check
          %p258 = pneg %p153
        $region30: #{tpu_custom_call.1} parent=11 // pred_check_branch
          %260 = sbr.rel (%p258) target = $region32
        $region31: #{tpu_custom_call.1} parent=11 // pred_region
          %s262 = ssub.s32 2048, 2048
          %263 = vsyncadd [#allocation6], %s262
          %s264 = sshll.u32 [#allocation7], 4
          %s265 = int_to_ptr.vmem [resolvable:$true] %s264
          %270 = dma.hbm_to_vmem [thread:$0]  %s5, 2048, %s265, [#allocation6], 128, 128, 8
        $region32: #{tpu_custom_call.1} parent=11 // pred_fallthru
          _
        // Predicated region
        $region33: #{tpu_custom_call.1} parent=11 // pred_check
          %p271 = pneg %p174
        $region34: #{tpu_custom_call.1} parent=11 // pred_check_branch
          %273 = sbr.rel (%p271) target = $region36
        $region35: #{tpu_custom_call.1} parent=11 // pred_region
          %s275 = ssub.s32 3072, 3072
          %276 = vsyncadd [#allocation9], %s275
          %s277 = sshll.u32 [#allocation8], 4
          %s278 = int_to_ptr.vmem [resolvable:$true] %s277
          %283 = dma.hbm_to_vmem [thread:$0]  %s6, 3072, %s278, [#allocation9], 64, 64, 4
        $region36: #{tpu_custom_call.1} parent=11 // pred_fallthru
          _
        // Predicated region
        $region37: #{tpu_custom_call.1} parent=11 // pred_check
          %p284 = pneg %p195
        $region38: #{tpu_custom_call.1} parent=11 // pred_check_branch
          %286 = sbr.rel (%p284) target = $region40
        $region39: #{tpu_custom_call.1} parent=11 // pred_region
          _
        $region40: #{tpu_custom_call.1} parent=11 // pred_fallthru
          _
      $region12: #{tpu_custom_call.1} parent=5 // pred_fallthru
        _
      %p287 = scmp.lt.s32.totalorder %s22, 2
      // Predicated region
      $region41: #{tpu_custom_call.1} parent=5 // pred_check
        %p288 = pneg %p287
      $region42: #{tpu_custom_call.1} parent=5 // pred_check_branch
        %290 = sbr.rel (%p288) target = $region44
      $region43: #{tpu_custom_call.1} parent=5 // pred_region
        // Predicated region
        $region45: #{tpu_custom_call.1} parent=43 // pred_check
          %p291 = pneg %p42
        $region46: #{tpu_custom_call.1} parent=43 // pred_check_branch
          %293 = sbr.rel (%p291) target = $region48
        $region47: #{tpu_custom_call.1} parent=43 // pred_region
          %s294 = sand.u32 %s32, 1
          %s295 = scalar_lea.sflag [#allocation3], %s294
          %s296 = sand.u32 %s32, 1
          %s297 = smul.addr %s296, 8
          %s298 = scalar_lea.vmem [#allocation2], %s297
          %s300 = ssub.s32 128, 128
          %301 = vsyncadd %s295, %s300
          %s302 = smul.addr %s22, 2
          %s303 = smul.addr %s302, 64
          %s304 = scalar_lea.hbm %s0, %s303
          %s305 = sshll.u32 %s298, 4
          %s306 = int_to_ptr.vmem [resolvable:$true] %s305
          %311 = dma.hbm_to_vmem [thread:$0]  %s304, 128, %s306, %s295, 64, 64, 4
        $region48: #{tpu_custom_call.1} parent=43 // pred_fallthru
          _
      $region44: #{tpu_custom_call.1} parent=5 // pred_fallthru
        _
      %p312 = scmp.le.s32.totalorder 1, %s22
      %p313 = scmp.lt.s32.totalorder %s22, 3
      %p314 = pnand %p312, %p313
      %p315 = pneg %p314
      // Predicated region
      $region49: #{tpu_custom_call.1} parent=5 // pred_check
        _
      $region50: #{tpu_custom_call.1} parent=5 // pred_check_branch
        %317 = sbr.rel (%p314) target = $region52
      $region51: #{tpu_custom_call.1} parent=5 // pred_region
        %s318 = ssub.s32 %s22, 1
        %s319 = sand.u32 %s35, 1
        %s320 = scalar_lea.sflag [#allocation3], %s319
        %s321 = sand.u32 %s35, 1
        %s322 = smul.addr %s321, 8
        %s323 = scalar_lea.vmem [#allocation2], %s322
        // Predicated region
        $region53: #{tpu_custom_call.1} parent=51 // pred_check
          %p324 = pneg %p48
        $region54: #{tpu_custom_call.1} parent=51 // pred_check_branch
          %326 = sbr.rel (%p324) target = $region56
        $region55: #{tpu_custom_call.1} parent=51 // pred_region
          %327 = dma.done %s320, 128
        $region56: #{tpu_custom_call.1} parent=51 // pred_fallthru
          _
        // Predicated region
        $region57: #{tpu_custom_call.1} parent=51 // pred_check
          %p328 = pneg %p69
        $region58: #{tpu_custom_call.1} parent=51 // pred_check_branch
          %330 = sbr.rel (%p328) target = $region60
        $region59: #{tpu_custom_call.1} parent=51 // pred_region
          %331 = dma.done [#allocation6], 3072
        $region60: #{tpu_custom_call.1} parent=51 // pred_fallthru
          _
        // Predicated region
        $region61: #{tpu_custom_call.1} parent=51 // pred_check
          %p332 = pneg %p153
        $region62: #{tpu_custom_call.1} parent=51 // pred_check_branch
          %334 = sbr.rel (%p332) target = $region64
        $region63: #{tpu_custom_call.1} parent=51 // pred_region
          %335 = dma.done [#allocation6], 2048
        $region64: #{tpu_custom_call.1} parent=51 // pred_fallthru
          _
        // Predicated region
        $region65: #{tpu_custom_call.1} parent=51 // pred_check
          %p336 = pneg %p174
        $region66: #{tpu_custom_call.1} parent=51 // pred_check_branch
          %338 = sbr.rel (%p336) target = $region68
        $region67: #{tpu_custom_call.1} parent=51 // pred_region
          %339 = dma.done [#allocation9], 3072
        $region68: #{tpu_custom_call.1} parent=51 // pred_fallthru
          _
        %s340 = sand.u32 %s35, 1
        %s341 = scalar_lea.sflag [#allocation3], %s340
        %s342 = sand.u32 %s35, 1
        %s343 = smul.addr %s342, 8
        %s344 = scalar_lea.vmem [#allocation2], %s343
        %p345 = pneg %p48
        %p346 = pneg %p45
        %p347 = pneg %p69
        %p348 = pneg %p66
        %p349 = pneg %p90
        %p350 = pneg %p87
        %p351 = pneg %p111
        %p352 = pneg %p108
        %p353 = pneg %p132
        %p354 = pneg %p129
        %p355 = pneg %p153
        %p356 = pneg %p150
        %p357 = pneg %p174
        %p358 = pneg %p171
        %p359 = pneg %p195
        %p360 = pneg %p192
        %p361 = pneg %p221
        %p362 = pneg %p218
        %s363 = sand.u32 %s208, 1
        %s364 = scalar_lea.sflag [#allocation4], %s363
        %s365 = sand.u32 %s208, 1
        %s366 = smul.addr %s365, 8
        %s367 = scalar_lea.vmem [#allocation10], %s366
        %v369 = vld [vmem:[%s323] sm:$0xf]
        %v370 = vld [vmem:[%s323 + $0x4] sm:$0xf]
        %v371 = vlaneseq
        %v372 = vshrl.u32 %v371, 7
        %v373 = vadd.s32 %v372, 8
        %v374 = vld [vmem:[%s2] sm:$0x1]
        %v375 = vld [vmem:[#allocation5] sm:$0xf]
        %v376 = vld [vmem:[#allocation5 + $0x4] sm:$0xf]
        %v377 = vld [vmem:[#allocation5 + $0x8] sm:$0xf]
        %v378 = vld [vmem:[#allocation5 + $0xc] sm:$0xf]
        %v379 = vld [vmem:[#allocation5 + $0x10] sm:$0xf]
        %v380 = vld [vmem:[#allocation5 + $0x14] sm:$0xf]
        %v381 = vld [vmem:[#allocation5 + $0x18] sm:$0xf]
        %v382 = vld [vmem:[#allocation5 + $0x1c] sm:$0xf]
        %v383 = vld [vmem:[#allocation5 + $0x20] sm:$0xf]
        %v384 = vld [vmem:[#allocation5 + $0x24] sm:$0xf]
        %v385 = vld [vmem:[#allocation5 + $0x28] sm:$0xf]
        %v386 = vld [vmem:[#allocation5 + $0x2c] sm:$0xf]
        %v387 = vld [vmem:[#allocation5 + $0x30] sm:$0xf]
        %v388 = vld [vmem:[#allocation5 + $0x34] sm:$0xf]
        %v389 = vld [vmem:[#allocation5 + $0x38] sm:$0xf]
        %v390 = vld [vmem:[#allocation5 + $0x3c] sm:$0xf]
        %v393 = vunpack.c.l.b16 %v369
        %v394 = vunpack.c.l.b16 %v370
        %v395 = vpack.c.b16 %v394, %v393
        %v413 = vunpack.c.l.b16 %v375
        %v414 = vunpack.c.l.b16 %v376
        %v415 = vunpack.c.l.b16 %v377
        %v416 = vunpack.c.l.b16 %v378
        %v417 = vunpack.c.l.b16 %v379
        %v418 = vunpack.c.l.b16 %v380
        %v419 = vunpack.c.l.b16 %v381
        %v420 = vunpack.c.l.b16 %v382
        %v421 = vunpack.c.l.b16 %v383
        %v422 = vunpack.c.l.b16 %v384
        %v423 = vunpack.c.l.b16 %v385
        %v424 = vunpack.c.l.b16 %v386
        %v425 = vunpack.c.l.b16 %v387
        %v426 = vunpack.c.l.b16 %v388
        %v427 = vunpack.c.l.b16 %v389
        %v428 = vunpack.c.l.b16 %v390
        %v429 = vpack.c.b16 %v414, %v413
        %v430 = vpack.c.b16 %v416, %v415
        %v431 = vpack.c.b16 %v418, %v417
        %v432 = vpack.c.b16 %v420, %v419
        %v433 = vpack.c.b16 %v422, %v421
        %v434 = vpack.c.b16 %v424, %v423
        %v435 = vpack.c.b16 %v426, %v425
        %v436 = vpack.c.b16 %v428, %v427
        %445 = vmatprep.subr.bf16.mxu0 0
        %446 = vmatpush1.bf16.msra.mxu0 %v429
        %447 = vmatprep.subr.bf16.mxu0 0
        %448 = vmatpush1.bf16.msra.mxu0 %v430
        %449 = vmatprep.subr.bf16.mxu0 0
        %450 = vmatpush1.bf16.msra.mxu0 %v431
        %451 = vmatprep.subr.bf16.mxu0 0
        %452 = vmatpush1.bf16.msra.mxu0 %v432
        %453 = vmatprep.subr.bf16.mxu0 0
        %454 = vmatpush1.bf16.msra.mxu0 %v433
        %455 = vmatprep.subr.bf16.mxu0 0
        %456 = vmatpush1.bf16.msra.mxu0 %v434
        %457 = vmatprep.subr.bf16.mxu0 0
        %458 = vmatpush1.bf16.msra.mxu0 %v435
        %459 = vmatprep.subr.bf16.mxu0 0
        %460 = vmatpush1.bf16.msra.mxu0 %v436
        %461 = vmatprep.subr.bf16.mxu0 0
        %462 = vmatpush1.bf16.msra.mxu0 0
        %463 = vmatprep.subr.bf16.mxu0 0
        %464 = vmatpush1.bf16.msra.mxu0 0
        %465 = vmatprep.subr.bf16.mxu0 0
        %466 = vmatpush1.bf16.msra.mxu0 0
        %467 = vmatprep.subr.bf16.mxu0 0
        %468 = vmatpush1.bf16.msra.mxu0 0
        %469 = vmatprep.subr.bf16.mxu0 0
        %470 = vmatpush1.bf16.msra.mxu0 0
        %471 = vmatprep.subr.bf16.mxu0 0
        %472 = vmatpush1.bf16.msra.mxu0 0
        %473 = vmatprep.subr.bf16.mxu0 0
        %474 = vmatpush1.bf16.msra.mxu0 0
        %475 = vmatprep.subr.bf16.mxu0 0
        %476 = vmatpush1.bf16.msra.mxu0 0
        %477 = vmatprep.mubr.bf16.mxu0 0
        %478 = vmatmul.mubr.bf16.gmra.mrb[0].mxu0 %v395
        %v479 = vpop.f32.mrb[0].mxu0
        %v480 = vadd.f32 0.0, %v479
        %v481 = vpop.f32.mrb[0].mxu0
        %v482 = vpop.f32.mrb[0].mxu0
        %v483 = vadd.f32 0.0, %v482
        %v484 = vpop.f32.mrb[0].mxu0
        %485 = vdwg.mxu0
        %s486 = scalar_lea.vmem [#allocation5], 64
        %v487 = vld [vmem:[%s486] sm:$0xf]
        %v488 = vld [vmem:[%s486 + $0x4] sm:$0xf]
        %v489 = vld [vmem:[%s486 + $0x8] sm:$0xf]
        %v490 = vld [vmem:[%s486 + $0xc] sm:$0xf]
        %v491 = vld [vmem:[%s486 + $0x10] sm:$0xf]
        %v492 = vld [vmem:[%s486 + $0x14] sm:$0xf]
        %v493 = vld [vmem:[%s486 + $0x18] sm:$0xf]
        %v494 = vld [vmem:[%s486 + $0x1c] sm:$0xf]
        %v495 = vld [vmem:[%s486 + $0x20] sm:$0xf]
        %v496 = vld [vmem:[%s486 + $0x24] sm:$0xf]
        %v497 = vld [vmem:[%s486 + $0x28] sm:$0xf]
        %v498 = vld [vmem:[%s486 + $0x2c] sm:$0xf]
        %v499 = vld [vmem:[%s486 + $0x30] sm:$0xf]
        %v500 = vld [vmem:[%s486 + $0x34] sm:$0xf]
        %v501 = vld [vmem:[%s486 + $0x38] sm:$0xf]
        %v502 = vld [vmem:[%s486 + $0x3c] sm:$0xf]
        %v519 = vunpack.c.l.b16 %v487
        %v520 = vunpack.c.l.b16 %v488
        %v521 = vunpack.c.l.b16 %v489
        %v522 = vunpack.c.l.b16 %v490
        %v523 = vunpack.c.l.b16 %v491
        %v524 = vunpack.c.l.b16 %v492
        %v525 = vunpack.c.l.b16 %v493
        %v526 = vunpack.c.l.b16 %v494
        %v527 = vunpack.c.l.b16 %v495
        %v528 = vunpack.c.l.b16 %v496
        %v529 = vunpack.c.l.b16 %v497
        %v530 = vunpack.c.l.b16 %v498
        %v531 = vunpack.c.l.b16 %v499
        %v532 = vunpack.c.l.b16 %v500
        %v533 = vunpack.c.l.b16 %v501
        %v534 = vunpack.c.l.b16 %v502
        %v535 = vpack.c.b16 %v520, %v519
        %v536 = vpack.c.b16 %v522, %v521
        %v537 = vpack.c.b16 %v524, %v523
        %v538 = vpack.c.b16 %v526, %v525
        %v539 = vpack.c.b16 %v528, %v527
        %v540 = vpack.c.b16 %v530, %v529
        %v541 = vpack.c.b16 %v532, %v531
        %v542 = vpack.c.b16 %v534, %v533
        %551 = vmatprep.subr.bf16.mxu0 0
        %552 = vmatpush1.bf16.msra.mxu0 %v535
        %553 = vmatprep.subr.bf16.mxu0 0
        %554 = vmatpush1.bf16.msra.mxu0 %v536
        %555 = vmatprep.subr.bf16.mxu0 0
        %556 = vmatpush1.bf16.msra.mxu0 %v537
        %557 = vmatprep.subr.bf16.mxu0 0
        %558 = vmatpush1.bf16.msra.mxu0 %v538
        %559 = vmatprep.subr.bf16.mxu0 0
        %560 = vmatpush1.bf16.msra.mxu0 %v539
        %561 = vmatprep.subr.bf16.mxu0 0
        %562 = vmatpush1.bf16.msra.mxu0 %v540
        %563 = vmatprep.subr.bf16.mxu0 0
        %564 = vmatpush1.bf16.msra.mxu0 %v541
        %565 = vmatprep.subr.bf16.mxu0 0
        %566 = vmatpush1.bf16.msra.mxu0 %v542
        %567 = vmatprep.subr.bf16.mxu0 0
        %568 = vmatpush1.bf16.msra.mxu0 0
        %569 = vmatprep.subr.bf16.mxu0 0
        %570 = vmatpush1.bf16.msra.mxu0 0
        %571 = vmatprep.subr.bf16.mxu0 0
        %572 = vmatpush1.bf16.msra.mxu0 0
        %573 = vmatprep.subr.bf16.mxu0 0
        %574 = vmatpush1.bf16.msra.mxu0 0
        %575 = vmatprep.subr.bf16.mxu0 0
        %576 = vmatpush1.bf16.msra.mxu0 0
        %577 = vmatprep.subr.bf16.mxu0 0
        %578 = vmatpush1.bf16.msra.mxu0 0
        %579 = vmatprep.subr.bf16.mxu0 0
        %580 = vmatpush1.bf16.msra.mxu0 0
        %581 = vmatprep.subr.bf16.mxu0 0
        %582 = vmatpush1.bf16.msra.mxu0 0
        %583 = vmatprep.mubr.bf16.mxu0 0
        %584 = vmatmul.mubr.bf16.gmra.mrb[0].mxu0 %v395
        %v585 = vpop.f32.mrb[0].mxu0
        %v586 = vadd.f32 0.0, %v585
        %v587 = vpop.f32.mrb[0].mxu0
        %v588 = vpop.f32.mrb[0].mxu0
        %v589 = vadd.f32 0.0, %v588
        %v590 = vpop.f32.mrb[0].mxu0
        %591 = vdwg.mxu0
        %s592 = scalar_lea.vmem [#allocation5], 128
        %v593 = vld [vmem:[%s592] sm:$0xf]
        %v594 = vld [vmem:[%s592 + $0x4] sm:$0xf]
        %v595 = vld [vmem:[%s592 + $0x8] sm:$0xf]
        %v596 = vld [vmem:[%s592 + $0xc] sm:$0xf]
        %v597 = vld [vmem:[%s592 + $0x10] sm:$0xf]
        %v598 = vld [vmem:[%s592 + $0x14] sm:$0xf]
        %v599 = vld [vmem:[%s592 + $0x18] sm:$0xf]
        %v600 = vld [vmem:[%s592 + $0x1c] sm:$0xf]
        %v601 = vld [vmem:[%s592 + $0x20] sm:$0xf]
        %v602 = vld [vmem:[%s592 + $0x24] sm:$0xf]
        %v603 = vld [vmem:[%s592 + $0x28] sm:$0xf]
        %v604 = vld [vmem:[%s592 + $0x2c] sm:$0xf]
        %v605 = vld [vmem:[%s592 + $0x30] sm:$0xf]
        %v606 = vld [vmem:[%s592 + $0x34] sm:$0xf]
        %v607 = vld [vmem:[%s592 + $0x38] sm:$0xf]
        %v608 = vld [vmem:[%s592 + $0x3c] sm:$0xf]
        %v625 = vunpack.c.l.b16 %v593
        %v626 = vunpack.c.l.b16 %v594
        %v627 = vunpack.c.l.b16 %v595
        %v628 = vunpack.c.l.b16 %v596
        %v629 = vunpack.c.l.b16 %v597
        %v630 = vunpack.c.l.b16 %v598
        %v631 = vunpack.c.l.b16 %v599
        %v632 = vunpack.c.l.b16 %v600
        %v633 = vunpack.c.l.b16 %v601
        %v634 = vunpack.c.l.b16 %v602
        %v635 = vunpack.c.l.b16 %v603
        %v636 = vunpack.c.l.b16 %v604
        %v637 = vunpack.c.l.b16 %v605
        %v638 = vunpack.c.l.b16 %v606
        %v639 = vunpack.c.l.b16 %v607
        %v640 = vunpack.c.l.b16 %v608
        %v641 = vpack.c.b16 %v626, %v625
        %v642 = vpack.c.b16 %v628, %v627
        %v643 = vpack.c.b16 %v630, %v629
        %v644 = vpack.c.b16 %v632, %v631
        %v645 = vpack.c.b16 %v634, %v633
        %v646 = vpack.c.b16 %v636, %v635
        %v647 = vpack.c.b16 %v638, %v637
        %v648 = vpack.c.b16 %v640, %v639
        %657 = vmatprep.subr.bf16.mxu0 0
        %658 = vmatpush1.bf16.msra.mxu0 %v641
        %659 = vmatprep.subr.bf16.mxu0 0
        %660 = vmatpush1.bf16.msra.mxu0 %v642
        %661 = vmatprep.subr.bf16.mxu0 0
        %662 = vmatpush1.bf16.msra.mxu0 %v643
        %663 = vmatprep.subr.bf16.mxu0 0
        %664 = vmatpush1.bf16.msra.mxu0 %v644
        %665 = vmatprep.subr.bf16.mxu0 0
        %666 = vmatpush1.bf16.msra.mxu0 %v645
        %667 = vmatprep.subr.bf16.mxu0 0
        %668 = vmatpush1.bf16.msra.mxu0 %v646
        %669 = vmatprep.subr.bf16.mxu0 0
        %670 = vmatpush1.bf16.msra.mxu0 %v647
        %671 = vmatprep.subr.bf16.mxu0 0
        %672 = vmatpush1.bf16.msra.mxu0 %v648
        %673 = vmatprep.subr.bf16.mxu0 0
        %674 = vmatpush1.bf16.msra.mxu0 0
        %675 = vmatprep.subr.bf16.mxu0 0
        %676 = vmatpush1.bf16.msra.mxu0 0
        %677 = vmatprep.subr.bf16.mxu0 0
        %678 = vmatpush1.bf16.msra.mxu0 0
        %679 = vmatprep.subr.bf16.mxu0 0
        %680 = vmatpush1.bf16.msra.mxu0 0
        %681 = vmatprep.subr.bf16.mxu0 0
        %682 = vmatpush1.bf16.msra.mxu0 0
        %683 = vmatprep.subr.bf16.mxu0 0
        %684 = vmatpush1.bf16.msra.mxu0 0
        %685 = vmatprep.subr.bf16.mxu0 0
        %686 = vmatpush1.bf16.msra.mxu0 0
        %687 = vmatprep.subr.bf16.mxu0 0
        %688 = vmatpush1.bf16.msra.mxu0 0
        %689 = vmatprep.mubr.bf16.mxu0 0
        %690 = vmatmul.mubr.bf16.gmra.mrb[0].mxu0 %v395
        %v691 = vpop.f32.mrb[0].mxu0
        %v692 = vadd.f32 0.0, %v691
        %v693 = vpop.f32.mrb[0].mxu0
        %v694 = vpop.f32.mrb[0].mxu0
        %v695 = vadd.f32 0.0, %v694
        %v696 = vpop.f32.mrb[0].mxu0
        %697 = vdwg.mxu0
        %vm698 = vcmp.gt.s32.totalorder %v372, 0
        %vm699 = vcmp.gt.s32.totalorder %v373, 0
        %v700 = vrot.slane %v480, 7
        %v701 = vrot.slane %v483, 7
        %vm702 = vcmp.lt.s32.totalorder %v372, 1
        %v703 = vsel %vm702, %v700, %v701
        %v704 = vsel %vm702, %v701, %v700
        %v705 = vsel %vm698, 1, 0
        %v706 = vsel %vm699, 1, 0
        %vm707 = vcmp.eq.s32.totalorder %v705, 1
        %vm708 = vcmp.eq.s32.totalorder %v706, 1
        %v709 = vsel %vm707, %v704, 0.0
        %v710 = vsel %vm708, %v703, 0.0
        %vm711 = vcmp.lt.s32.totalorder %v372, 15
        %vm712 = vcmp.lt.s32.totalorder %v373, 15
        %v713 = vrot.slane %v692, 1
        %v714 = vrot.slane %v695, 1
        %vm715 = vcmp.lt.s32.totalorder %v372, 7
        %v716 = vsel %vm715, %v713, %v714
        %v717 = vsel %vm715, %v714, %v713
        %v718 = vsel %vm711, 1, 0
        %v719 = vsel %vm712, 1, 0
        %vm720 = vcmp.eq.s32.totalorder %v718, 1
        %vm721 = vcmp.eq.s32.totalorder %v719, 1
        %v722 = vsel %vm720, %v716, 0.0
        %v723 = vsel %vm721, %v717, 0.0
        %v724 = vadd.f32 %v709, %v586
        %v725 = vadd.f32 %v710, %v589
        %v726 = vadd.f32 %v724, %v722
        %v727 = vadd.f32 %v725, %v723
        %v729 = vlaneseq
        %v730 = vshrl.u32 %v729, 7
        %v731 = vsub.s32 0, %v730
        %v732 = vrot.slane %v374, %v731
        %v734 = vadd.f32 %v726, %v732
        %v735 = vadd.f32 %v727, %v732
        %v736 = vld [vmem:[#allocation7] sm:$0xff]
        %v737 = vld [vmem:[#allocation7 + $0x8] sm:$0xff]
        %v738 = vld [vmem:[#allocation7 + $0x10] sm:$0xff]
        %v739 = vld [vmem:[#allocation7 + $0x18] sm:$0xff]
        %v740 = vld [vmem:[#allocation7 + $0x20] sm:$0xff]
        %v741 = vld [vmem:[#allocation7 + $0x28] sm:$0xff]
        %v742 = vld [vmem:[#allocation7 + $0x30] sm:$0xff]
        %v743 = vld [vmem:[#allocation7 + $0x38] sm:$0xff]
        %v744 = vld [vmem:[#allocation7 + $0x40] sm:$0xff]
        %v745 = vld [vmem:[#allocation7 + $0x48] sm:$0xff]
        %v746 = vld [vmem:[#allocation7 + $0x50] sm:$0xff]
        %v747 = vld [vmem:[#allocation7 + $0x58] sm:$0xff]
        %v748 = vld [vmem:[#allocation7 + $0x60] sm:$0xff]
        %v749 = vld [vmem:[#allocation7 + $0x68] sm:$0xff]
        %v750 = vld [vmem:[#allocation7 + $0x70] sm:$0xff]
        %v751 = vld [vmem:[#allocation7 + $0x78] sm:$0xff]
        %vm752 = vcmask 130048
        %v754 = vsel %vm752, 1.0, 0
        %756 = vmatprep.subr.mxu0 0.0
        %757 = vmatpush1.msra.mxu0 %v734
        %758 = vmatprep.subr.mxu0 0.0
        %759 = vmatpush1.msra.mxu0 %v735
        %760 = vmatprep.subr.mxu0 0.0
        %761 = vmatpush1.msra.mxu0 0.0
        %762 = vmatprep.subr.mxu0 0.0
        %763 = vmatpush1.msra.mxu0 0.0
        %764 = vmatprep.subr.mxu0 0.0
        %765 = vmatpush1.msra.mxu0 0.0
        %766 = vmatprep.subr.mxu0 0.0
        %767 = vmatpush1.msra.mxu0 0.0
        %768 = vmatprep.subr.mxu0 0.0
        %769 = vmatpush1.msra.mxu0 0.0
        %770 = vmatprep.subr.mxu0 0.0
        %771 = vmatpush1.msra.mxu0 0.0
        %772 = vmatprep.subr.mxu0 0.0
        %773 = vmatpush1.msra.mxu0 0.0
        %774 = vmatprep.subr.mxu0 0.0
        %775 = vmatpush1.msra.mxu0 0.0
        %776 = vmatprep.subr.mxu0 0.0
        %777 = vmatpush1.msra.mxu0 0.0
        %778 = vmatprep.subr.mxu0 0.0
        %779 = vmatpush1.msra.mxu0 0.0
        %780 = vmatprep.subr.mxu0 0.0
        %781 = vmatpush1.msra.mxu0 0.0
        %782 = vmatprep.subr.mxu0 0.0
        %783 = vmatpush1.msra.mxu0 0.0
        %784 = vmatprep.subr.mxu0 0.0
        %785 = vmatpush1.msra.mxu0 0.0
        %786 = vmatprep.subr.mxu0 0.0
        %787 = vmatpush1.msra.mxu0 0.0
        %788 = vmatprep.subr.mxu0 0.0
        %789 = vmatpush1.msra.mxu0 0.0
        %790 = vmatprep.subr.mxu0 0.0
        %791 = vmatpush1.msra.mxu0 0.0
        %792 = vmatprep.subr.mxu0 0.0
        %793 = vmatpush1.msra.mxu0 0.0
        %794 = vmatprep.subr.mxu0 0.0
        %795 = vmatpush1.msra.mxu0 0.0
        %796 = vmatprep.subr.mxu0 0.0
        %797 = vmatpush1.msra.mxu0 0.0
        %798 = vmatprep.subr.mxu0 0.0
        %799 = vmatpush1.msra.mxu0 0.0
        %800 = vmatprep.subr.mxu0 0.0
        %801 = vmatpush1.msra.mxu0 0.0
        %802 = vmatprep.subr.mxu0 0.0
        %803 = vmatpush1.msra.mxu0 0.0
        %804 = vmatprep.subr.mxu0 0.0
        %805 = vmatpush1.msra.mxu0 0.0
        %806 = vmatprep.subr.mxu0 0.0
        %807 = vmatpush1.msra.mxu0 0.0
        %808 = vmatprep.subr.mxu0 0.0
        %809 = vmatpush1.msra.mxu0 0.0
        %810 = vmatprep.subr.mxu0 0.0
        %811 = vmatpush1.msra.mxu0 0.0
        %812 = vmatprep.subr.mxu0 0.0
        %813 = vmatpush1.msra.mxu0 0.0
        %814 = vmatprep.subr.mxu0 0.0
        %815 = vmatpush1.msra.mxu0 0.0
        %816 = vmatprep.subr.mxu0 0.0
        %817 = vmatpush1.msra.mxu0 0.0
        %818 = vmatprep.subr.mxu0 0.0
        %819 = vmatpush1.msra.mxu0 0.0
        %820 = vmatprep.mubr.f32.mxu0 0.0
        %821 = vmatmul.mubr.f32.gmra.mrb[0].mxu0 %v754
        %v822 = vpop.f32.mrb[0].mxu0
        %v823 = vadd.f32 0.0, %v822
        %v824 = vpop.f32.mrb[0].mxu0
        %825 = vdwg.mxu0
        %826 = vmatprep.subr.mxu0 0.0
        %827 = vmatpush1.msra.mxu0 %v736
        %828 = vmatprep.subr.mxu0 0.0
        %829 = vmatpush1.msra.mxu0 %v737
        %830 = vmatprep.subr.mxu0 0.0
        %831 = vmatpush1.msra.mxu0 %v738
        %832 = vmatprep.subr.mxu0 0.0
        %833 = vmatpush1.msra.mxu0 %v739
        %834 = vmatprep.subr.mxu0 0.0
        %835 = vmatpush1.msra.mxu0 %v740
        %836 = vmatprep.subr.mxu0 0.0
        %837 = vmatpush1.msra.mxu0 %v741
        %838 = vmatprep.subr.mxu0 0.0
        %839 = vmatpush1.msra.mxu0 %v742
        %840 = vmatprep.subr.mxu0 0.0
        %841 = vmatpush1.msra.mxu0 %v743
        %842 = vmatprep.subr.mxu0 0.0
        %843 = vmatpush1.msra.mxu0 %v744
        %844 = vmatprep.subr.mxu0 0.0
        %845 = vmatpush1.msra.mxu0 %v745
        %846 = vmatprep.subr.mxu0 0.0
        %847 = vmatpush1.msra.mxu0 %v746
        %848 = vmatprep.subr.mxu0 0.0
        %849 = vmatpush1.msra.mxu0 %v747
        %850 = vmatprep.subr.mxu0 0.0
        %851 = vmatpush1.msra.mxu0 %v748
        %852 = vmatprep.subr.mxu0 0.0
        %853 = vmatpush1.msra.mxu0 %v749
        %854 = vmatprep.subr.mxu0 0.0
        %855 = vmatpush1.msra.mxu0 %v750
        %856 = vmatprep.subr.mxu0 0.0
        %857 = vmatpush1.msra.mxu0 %v751
        %858 = vmatprep.subr.mxu0 0.0
        %859 = vmatpush1.msra.mxu0 0.0
        %860 = vmatprep.subr.mxu0 0.0
        %861 = vmatpush1.msra.mxu0 0.0
        %862 = vmatprep.subr.mxu0 0.0
        %863 = vmatpush1.msra.mxu0 0.0
        %864 = vmatprep.subr.mxu0 0.0
        %865 = vmatpush1.msra.mxu0 0.0
        %866 = vmatprep.subr.mxu0 0.0
        %867 = vmatpush1.msra.mxu0 0.0
        %868 = vmatprep.subr.mxu0 0.0
        %869 = vmatpush1.msra.mxu0 0.0
        %870 = vmatprep.subr.mxu0 0.0
        %871 = vmatpush1.msra.mxu0 0.0
        %872 = vmatprep.subr.mxu0 0.0
        %873 = vmatpush1.msra.mxu0 0.0
        %874 = vmatprep.subr.mxu0 0.0
        %875 = vmatpush1.msra.mxu0 0.0
        %876 = vmatprep.subr.mxu0 0.0
        %877 = vmatpush1.msra.mxu0 0.0
        %878 = vmatprep.subr.mxu0 0.0
        %879 = vmatpush1.msra.mxu0 0.0
        %880 = vmatprep.subr.mxu0 0.0
        %881 = vmatpush1.msra.mxu0 0.0
        %882 = vmatprep.subr.mxu0 0.0
        %883 = vmatpush1.msra.mxu0 0.0
        %884 = vmatprep.subr.mxu0 0.0
        %885 = vmatpush1.msra.mxu0 0.0
        %886 = vmatprep.subr.mxu0 0.0
        %887 = vmatpush1.msra.mxu0 0.0
        %888 = vmatprep.subr.mxu0 0.0
        %889 = vmatpush1.msra.mxu0 0.0
        %890 = vmatprep.mubr.f32.mxu0 0.0
        %891 = vmatmul.mubr.f32.gmra.mrb[0].mxu0 %v823
        %v892 = vpop.f32.mrb[0].mxu0
        %v893 = vadd.f32 0.0, %v892
        %v894 = vpop.f32.mrb[0].mxu0
        %895 = vdwg.mxu0
        %v896 = vmul.f32 %v893, 0.015625
        %897 = vmatprep.subr.mxu0 0.0
        %898 = vmatpush1.xpose.msra.mxu0 %v736
        %899 = vmatprep.subr.mxu0 0.0
        %900 = vmatpush1.xpose.msra.mxu0 %v737
        %901 = vmatprep.subr.mxu0 0.0
        %902 = vmatpush1.xpose.msra.mxu0 %v738
        %903 = vmatprep.subr.mxu0 0.0
        %904 = vmatpush1.xpose.msra.mxu0 %v739
        %905 = vmatprep.subr.mxu0 0.0
        %906 = vmatpush1.xpose.msra.mxu0 %v740
        %907 = vmatprep.subr.mxu0 0.0
        %908 = vmatpush1.xpose.msra.mxu0 %v741
        %909 = vmatprep.subr.mxu0 0.0
        %910 = vmatpush1.xpose.msra.mxu0 %v742
        %911 = vmatprep.subr.mxu0 0.0
        %912 = vmatpush1.xpose.msra.mxu0 %v743
        %913 = vmatprep.subr.mxu0 0.0
        %914 = vmatpush1.xpose.msra.mxu0 %v744
        %915 = vmatprep.subr.mxu0 0.0
        %916 = vmatpush1.xpose.msra.mxu0 %v745
        %917 = vmatprep.subr.mxu0 0.0
        %918 = vmatpush1.xpose.msra.mxu0 %v746
        %919 = vmatprep.subr.mxu0 0.0
        %920 = vmatpush1.xpose.msra.mxu0 %v747
        %921 = vmatprep.subr.mxu0 0.0
        %922 = vmatpush1.xpose.msra.mxu0 %v748
        %923 = vmatprep.subr.mxu0 0.0
        %924 = vmatpush1.xpose.msra.mxu0 %v749
        %925 = vmatprep.subr.mxu0 0.0
        %926 = vmatpush1.xpose.msra.mxu0 %v750
        %927 = vmatprep.subr.mxu0 0.0
        %928 = vmatpush1.xpose.msra.mxu0 %v751
        %929 = vmatprep.subr.mxu0 0.0
        %930 = vmatpush1.xpose.msra.mxu0 0.0
        %931 = vmatprep.subr.mxu0 0.0
        %932 = vmatpush1.xpose.msra.mxu0 0.0
        %933 = vmatprep.subr.mxu0 0.0
        %934 = vmatpush1.xpose.msra.mxu0 0.0
        %935 = vmatprep.subr.mxu0 0.0
        %936 = vmatpush1.xpose.msra.mxu0 0.0
        %937 = vmatprep.subr.mxu0 0.0
        %938 = vmatpush1.xpose.msra.mxu0 0.0
        %939 = vmatprep.subr.mxu0 0.0
        %940 = vmatpush1.xpose.msra.mxu0 0.0
        %941 = vmatprep.subr.mxu0 0.0
        %942 = vmatpush1.xpose.msra.mxu0 0.0
        %943 = vmatprep.subr.mxu0 0.0
        %944 = vmatpush1.xpose.msra.mxu0 0.0
        %945 = vmatprep.subr.mxu0 0.0
        %946 = vmatpush1.xpose.msra.mxu0 0.0
        %947 = vmatprep.subr.mxu0 0.0
        %948 = vmatpush1.xpose.msra.mxu0 0.0
        %949 = vmatprep.subr.mxu0 0.0
        %950 = vmatpush1.xpose.msra.mxu0 0.0
        %951 = vmatprep.subr.mxu0 0.0
        %952 = vmatpush1.xpose.msra.mxu0 0.0
        %953 = vmatprep.subr.mxu0 0.0
        %954 = vmatpush1.xpose.msra.mxu0 0.0
        %955 = vmatprep.subr.mxu0 0.0
        %956 = vmatpush1.xpose.msra.mxu0 0.0
        %957 = vmatprep.subr.mxu0 0.0
        %958 = vmatpush1.xpose.msra.mxu0 0.0
        %959 = vmatprep.subr.mxu0 0.0
        %960 = vmatpush1.xpose.msra.mxu0 0.0
        %961 = vmatprep.mubr.f32.mxu0 0.0
        %962 = vmatmul.mubr.f32.gmra.mrb[0].mxu0 %v896
        %v963 = vpop.f32.mrb[0].mxu0
        %v964 = vadd.f32 0.0, %v963
        %v965 = vpop.f32.mrb[0].mxu0
        %966 = vdwg.mxu0
        %v967 = vlaneseq
        %v968 = vshrl.u32 %v967, 7
        %v969 = vsub.s32 0, %v968
        %v970 = vrot.slane %v964, %v969
        %v971 = vsub.f32 %v734, %v970
        %v972 = vsub.f32 %v735, %v970
        %v973 = vmul.f32 %v971, %v971
        %v974 = vmul.f32 %v972, %v972
        %975 = vmatprep.subr.mxu0 0.0
        %976 = vmatpush1.msra.mxu0 %v973
        %977 = vmatprep.subr.mxu0 0.0
        %978 = vmatpush1.msra.mxu0 %v974
        %979 = vmatprep.subr.mxu0 0.0
        %980 = vmatpush1.msra.mxu0 0.0
        %981 = vmatprep.subr.mxu0 0.0
        %982 = vmatpush1.msra.mxu0 0.0
        %983 = vmatprep.subr.mxu0 0.0
        %984 = vmatpush1.msra.mxu0 0.0
        %985 = vmatprep.subr.mxu0 0.0
        %986 = vmatpush1.msra.mxu0 0.0
        %987 = vmatprep.subr.mxu0 0.0
        %988 = vmatpush1.msra.mxu0 0.0
        %989 = vmatprep.subr.mxu0 0.0
        %990 = vmatpush1.msra.mxu0 0.0
        %991 = vmatprep.subr.mxu0 0.0
        %992 = vmatpush1.msra.mxu0 0.0
        %993 = vmatprep.subr.mxu0 0.0
        %994 = vmatpush1.msra.mxu0 0.0
        %995 = vmatprep.subr.mxu0 0.0
        %996 = vmatpush1.msra.mxu0 0.0
        %997 = vmatprep.subr.mxu0 0.0
        %998 = vmatpush1.msra.mxu0 0.0
        %999 = vmatprep.subr.mxu0 0.0
        %1000 = vmatpush1.msra.mxu0 0.0
        %1001 = vmatprep.subr.mxu0 0.0
        %1002 = vmatpush1.msra.mxu0 0.0
        %1003 = vmatprep.subr.mxu0 0.0
        %1004 = vmatpush1.msra.mxu0 0.0
        %1005 = vmatprep.subr.mxu0 0.0
        %1006 = vmatpush1.msra.mxu0 0.0
        %1007 = vmatprep.subr.mxu0 0.0
        %1008 = vmatpush1.msra.mxu0 0.0
        %1009 = vmatprep.subr.mxu0 0.0
        %1010 = vmatpush1.msra.mxu0 0.0
        %1011 = vmatprep.subr.mxu0 0.0
        %1012 = vmatpush1.msra.mxu0 0.0
        %1013 = vmatprep.subr.mxu0 0.0
        %1014 = vmatpush1.msra.mxu0 0.0
        %1015 = vmatprep.subr.mxu0 0.0
        %1016 = vmatpush1.msra.mxu0 0.0
        %1017 = vmatprep.subr.mxu0 0.0
        %1018 = vmatpush1.msra.mxu0 0.0
        %1019 = vmatprep.subr.mxu0 0.0
        %1020 = vmatpush1.msra.mxu0 0.0
        %1021 = vmatprep.subr.mxu0 0.0
        %1022 = vmatpush1.msra.mxu0 0.0
        %1023 = vmatprep.subr.mxu0 0.0
        %1024 = vmatpush1.msra.mxu0 0.0
        %1025 = vmatprep.subr.mxu0 0.0
        %1026 = vmatpush1.msra.mxu0 0.0
        %1027 = vmatprep.subr.mxu0 0.0
        %1028 = vmatpush1.msra.mxu0 0.0
        %1029 = vmatprep.subr.mxu0 0.0
        %1030 = vmatpush1.msra.mxu0 0.0
        %1031 = vmatprep.subr.mxu0 0.0
        %1032 = vmatpush1.msra.mxu0 0.0
        %1033 = vmatprep.subr.mxu0 0.0
        %1034 = vmatpush1.msra.mxu0 0.0
        %1035 = vmatprep.subr.mxu0 0.0
        %1036 = vmatpush1.msra.mxu0 0.0
        %1037 = vmatprep.subr.mxu0 0.0
        %1038 = vmatpush1.msra.mxu0 0.0
        %1039 = vmatprep.mubr.f32.mxu0 0.0
        %1040 = vmatmul.mubr.f32.gmra.mrb[0].mxu0 %v754
        %v1041 = vpop.f32.mrb[0].mxu0
        %v1042 = vadd.f32 0.0, %v1041
        %v1043 = vpop.f32.mrb[0].mxu0
        %1044 = vdwg.mxu0
        %1045 = vmatprep.subr.mxu0 0.0
        %1046 = vmatpush1.msra.mxu0 %v736
        %1047 = vmatprep.subr.mxu0 0.0
        %1048 = vmatpush1.msra.mxu0 %v737
        %1049 = vmatprep.subr.mxu0 0.0
        %1050 = vmatpush1.msra.mxu0 %v738
        %1051 = vmatprep.subr.mxu0 0.0
        %1052 = vmatpush1.msra.mxu0 %v739
        %1053 = vmatprep.subr.mxu0 0.0
        %1054 = vmatpush1.msra.mxu0 %v740
        %1055 = vmatprep.subr.mxu0 0.0
        %1056 = vmatpush1.msra.mxu0 %v741
        %1057 = vmatprep.subr.mxu0 0.0
        %1058 = vmatpush1.msra.mxu0 %v742
        %1059 = vmatprep.subr.mxu0 0.0
        %1060 = vmatpush1.msra.mxu0 %v743
        %1061 = vmatprep.subr.mxu0 0.0
        %1062 = vmatpush1.msra.mxu0 %v744
        %1063 = vmatprep.subr.mxu0 0.0
        %1064 = vmatpush1.msra.mxu0 %v745
        %1065 = vmatprep.subr.mxu0 0.0
        %1066 = vmatpush1.msra.mxu0 %v746
        %1067 = vmatprep.subr.mxu0 0.0
        %1068 = vmatpush1.msra.mxu0 %v747
        %1069 = vmatprep.subr.mxu0 0.0
        %1070 = vmatpush1.msra.mxu0 %v748
        %1071 = vmatprep.subr.mxu0 0.0
        %1072 = vmatpush1.msra.mxu0 %v749
        %1073 = vmatprep.subr.mxu0 0.0
        %1074 = vmatpush1.msra.mxu0 %v750
        %1075 = vmatprep.subr.mxu0 0.0
        %1076 = vmatpush1.msra.mxu0 %v751
        %1077 = vmatprep.subr.mxu0 0.0
        %1078 = vmatpush1.msra.mxu0 0.0
        %1079 = vmatprep.subr.mxu0 0.0
        %1080 = vmatpush1.msra.mxu0 0.0
        %1081 = vmatprep.subr.mxu0 0.0
        %1082 = vmatpush1.msra.mxu0 0.0
        %1083 = vmatprep.subr.mxu0 0.0
        %1084 = vmatpush1.msra.mxu0 0.0
        %1085 = vmatprep.subr.mxu0 0.0
        %1086 = vmatpush1.msra.mxu0 0.0
        %1087 = vmatprep.subr.mxu0 0.0
        %1088 = vmatpush1.msra.mxu0 0.0
        %1089 = vmatprep.subr.mxu0 0.0
        %1090 = vmatpush1.msra.mxu0 0.0
        %1091 = vmatprep.subr.mxu0 0.0
        %1092 = vmatpush1.msra.mxu0 0.0
        %1093 = vmatprep.subr.mxu0 0.0
        %1094 = vmatpush1.msra.mxu0 0.0
        %1095 = vmatprep.subr.mxu0 0.0
        %1096 = vmatpush1.msra.mxu0 0.0
        %1097 = vmatprep.subr.mxu0 0.0
        %1098 = vmatpush1.msra.mxu0 0.0
        %1099 = vmatprep.subr.mxu0 0.0
        %1100 = vmatpush1.msra.mxu0 0.0
        %1101 = vmatprep.subr.mxu0 0.0
        %1102 = vmatpush1.msra.mxu0 0.0
        %1103 = vmatprep.subr.mxu0 0.0
        %1104 = vmatpush1.msra.mxu0 0.0
        %1105 = vmatprep.subr.mxu0 0.0
        %1106 = vmatpush1.msra.mxu0 0.0
        %1107 = vmatprep.subr.mxu0 0.0
        %1108 = vmatpush1.msra.mxu0 0.0
        %1109 = vmatprep.mubr.f32.mxu0 0.0
        %1110 = vmatmul.mubr.f32.gmra.mrb[0].mxu0 %v1042
        %v1111 = vpop.f32.mrb[0].mxu0
        %v1112 = vadd.f32 0.0, %v1111
        %v1113 = vpop.f32.mrb[0].mxu0
        %1114 = vdwg.mxu0
        %v1115 = vmul.f32 %v1112, 0.015625
        %v1116 = vadd.f32 %v1115, 1e-05
        %v1117 = vrsqrt.pop %v1116
        %1118 = vmatprep.subr.mxu0 0.0
        %1119 = vmatpush1.xpose.msra.mxu0 %v736
        %1120 = vmatprep.subr.mxu0 0.0
        %1121 = vmatpush1.xpose.msra.mxu0 %v737
        %1122 = vmatprep.subr.mxu0 0.0
        %1123 = vmatpush1.xpose.msra.mxu0 %v738
        %1124 = vmatprep.subr.mxu0 0.0
        %1125 = vmatpush1.xpose.msra.mxu0 %v739
        %1126 = vmatprep.subr.mxu0 0.0
        %1127 = vmatpush1.xpose.msra.mxu0 %v740
        %1128 = vmatprep.subr.mxu0 0.0
        %1129 = vmatpush1.xpose.msra.mxu0 %v741
        %1130 = vmatprep.subr.mxu0 0.0
        %1131 = vmatpush1.xpose.msra.mxu0 %v742
        %1132 = vmatprep.subr.mxu0 0.0
        %1133 = vmatpush1.xpose.msra.mxu0 %v743
        %1134 = vmatprep.subr.mxu0 0.0
        %1135 = vmatpush1.xpose.msra.mxu0 %v744
        %1136 = vmatprep.subr.mxu0 0.0
        %1137 = vmatpush1.xpose.msra.mxu0 %v745
        %1138 = vmatprep.subr.mxu0 0.0
        %1139 = vmatpush1.xpose.msra.mxu0 %v746
        %1140 = vmatprep.subr.mxu0 0.0
        %1141 = vmatpush1.xpose.msra.mxu0 %v747
        %1142 = vmatprep.subr.mxu0 0.0
        %1143 = vmatpush1.xpose.msra.mxu0 %v748
        %1144 = vmatprep.subr.mxu0 0.0
        %1145 = vmatpush1.xpose.msra.mxu0 %v749
        %1146 = vmatprep.subr.mxu0 0.0
        %1147 = vmatpush1.xpose.msra.mxu0 %v750
        %1148 = vmatprep.subr.mxu0 0.0
        %1149 = vmatpush1.xpose.msra.mxu0 %v751
        %1150 = vmatprep.subr.mxu0 0.0
        %1151 = vmatpush1.xpose.msra.mxu0 0.0
        %1152 = vmatprep.subr.mxu0 0.0
        %1153 = vmatpush1.xpose.msra.mxu0 0.0
        %1154 = vmatprep.subr.mxu0 0.0
        %1155 = vmatpush1.xpose.msra.mxu0 0.0
        %1156 = vmatprep.subr.mxu0 0.0
        %1157 = vmatpush1.xpose.msra.mxu0 0.0
        %1158 = vmatprep.subr.mxu0 0.0
        %1159 = vmatpush1.xpose.msra.mxu0 0.0
        %1160 = vmatprep.subr.mxu0 0.0
        %1161 = vmatpush1.xpose.msra.mxu0 0.0
        %1162 = vmatprep.subr.mxu0 0.0
        %1163 = vmatpush1.xpose.msra.mxu0 0.0
        %1164 = vmatprep.subr.mxu0 0.0
        %1165 = vmatpush1.xpose.msra.mxu0 0.0
        %1166 = vmatprep.subr.mxu0 0.0
        %1167 = vmatpush1.xpose.msra.mxu0 0.0
        %1168 = vmatprep.subr.mxu0 0.0
        %1169 = vmatpush1.xpose.msra.mxu0 0.0
        %1170 = vmatprep.subr.mxu0 0.0
        %1171 = vmatpush1.xpose.msra.mxu0 0.0
        %1172 = vmatprep.subr.mxu0 0.0
        %1173 = vmatpush1.xpose.msra.mxu0 0.0
        %1174 = vmatprep.subr.mxu0 0.0
        %1175 = vmatpush1.xpose.msra.mxu0 0.0
        %1176 = vmatprep.subr.mxu0 0.0
        %1177 = vmatpush1.xpose.msra.mxu0 0.0
        %1178 = vmatprep.subr.mxu0 0.0
        %1179 = vmatpush1.xpose.msra.mxu0 0.0
        %1180 = vmatprep.subr.mxu0 0.0
        %1181 = vmatpush1.xpose.msra.mxu0 0.0
        %1182 = vmatprep.mubr.f32.mxu0 0.0
        %1183 = vmatmul.mubr.f32.gmra.mrb[0].mxu0 %v1117
        %v1184 = vpop.f32.mrb[0].mxu0
        %v1185 = vadd.f32 0.0, %v1184
        %v1186 = vpop.f32.mrb[0].mxu0
        %1187 = vdwg.mxu0
        %v1188 = vld [vmem:[%s3] sm:$0x1]
        %v1189 = vmul.f32 %v1185, %v1188
        %v1190 = vlaneseq
        %v1191 = vshrl.u32 %v1190, 7
        %v1192 = vsub.s32 0, %v1191
        %v1193 = vrot.slane %v1189, %v1192
        %v1194 = vmul.f32 %v971, %v1193
        %v1195 = vmul.f32 %v972, %v1193
        %v1196 = vld [vmem:[%s4] sm:$0x1]
        %v1198 = vlaneseq
        %v1199 = vshrl.u32 %v1198, 7
        %v1200 = vsub.s32 0, %v1199
        %v1201 = vrot.slane %v1196, %v1200
        %v1203 = vadd.f32 %v1194, %v1201
        %v1204 = vadd.f32 %v1195, %v1201
        %v1205 = vmul.f32 %v1203, 0.01
        %v1206 = vmul.f32 %v1204, 0.01
        %v1207 = vmax.f32 %v1203, %v1205
        %v1208 = vmax.f32 %v1204, %v1206
        %v1209 = vpack.c.bf16 %v1208, %v1207
        %v1210 = vld [vmem:[%s7] sm:$0x1]
        %v1211 = vld [vmem:[#allocation8] sm:$0xf]
        %v1212 = vld [vmem:[#allocation8 + $0x4] sm:$0xf]
        %v1213 = vld [vmem:[#allocation8 + $0x8] sm:$0xf]
        %v1214 = vld [vmem:[#allocation8 + $0xc] sm:$0xf]
        %v1215 = vld [vmem:[#allocation8 + $0x10] sm:$0xf]
        %v1216 = vld [vmem:[#allocation8 + $0x14] sm:$0xf]
        %v1217 = vld [vmem:[#allocation8 + $0x18] sm:$0xf]
        %v1218 = vld [vmem:[#allocation8 + $0x1c] sm:$0xf]
        %v1219 = vld [vmem:[#allocation8 + $0x20] sm:$0xf]
        %v1220 = vld [vmem:[#allocation8 + $0x24] sm:$0xf]
        %v1221 = vld [vmem:[#allocation8 + $0x28] sm:$0xf]
        %v1222 = vld [vmem:[#allocation8 + $0x2c] sm:$0xf]
        %v1223 = vld [vmem:[#allocation8 + $0x30] sm:$0xf]
        %v1224 = vld [vmem:[#allocation8 + $0x34] sm:$0xf]
        %v1225 = vld [vmem:[#allocation8 + $0x38] sm:$0xf]
        %v1226 = vld [vmem:[#allocation8 + $0x3c] sm:$0xf]
        %v1243 = vunpack.c.l.b16 %v1211
        %v1244 = vunpack.c.l.b16 %v1212
        %v1245 = vunpack.c.l.b16 %v1213
        %v1246 = vunpack.c.l.b16 %v1214
        %v1247 = vunpack.c.l.b16 %v1215
        %v1248 = vunpack.c.l.b16 %v1216
        %v1249 = vunpack.c.l.b16 %v1217
        %v1250 = vunpack.c.l.b16 %v1218
        %v1251 = vunpack.c.l.b16 %v1219
        %v1252 = vunpack.c.l.b16 %v1220
        %v1253 = vunpack.c.l.b16 %v1221
        %v1254 = vunpack.c.l.b16 %v1222
        %v1255 = vunpack.c.l.b16 %v1223
        %v1256 = vunpack.c.l.b16 %v1224
        %v1257 = vunpack.c.l.b16 %v1225
        %v1258 = vunpack.c.l.b16 %v1226
        %v1259 = vpack.c.b16 %v1244, %v1243
        %v1260 = vpack.c.b16 %v1246, %v1245
        %v1261 = vpack.c.b16 %v1248, %v1247
        %v1262 = vpack.c.b16 %v1250, %v1249
        %v1263 = vpack.c.b16 %v1252, %v1251
        %v1264 = vpack.c.b16 %v1254, %v1253
        %v1265 = vpack.c.b16 %v1256, %v1255
        %v1266 = vpack.c.b16 %v1258, %v1257
        %1275 = vmatprep.subr.bf16.mxu0 0
        %1276 = vmatpush1.bf16.msra.mxu0 %v1259
        %1277 = vmatprep.subr.bf16.mxu0 0
        %1278 = vmatpush1.bf16.msra.mxu0 %v1260
        %1279 = vmatprep.subr.bf16.mxu0 0
        %1280 = vmatpush1.bf16.msra.mxu0 %v1261
        %1281 = vmatprep.subr.bf16.mxu0 0
        %1282 = vmatpush1.bf16.msra.mxu0 %v1262
        %1283 = vmatprep.subr.bf16.mxu0 0
        %1284 = vmatpush1.bf16.msra.mxu0 %v1263
        %1285 = vmatprep.subr.bf16.mxu0 0
        %1286 = vmatpush1.bf16.msra.mxu0 %v1264
        %1287 = vmatprep.subr.bf16.mxu0 0
        %1288 = vmatpush1.bf16.msra.mxu0 %v1265
        %1289 = vmatprep.subr.bf16.mxu0 0
        %1290 = vmatpush1.bf16.msra.mxu0 %v1266
        %1291 = vmatprep.subr.bf16.mxu0 0
        %1292 = vmatpush1.bf16.msra.mxu0 0
        %1293 = vmatprep.subr.bf16.mxu0 0
        %1294 = vmatpush1.bf16.msra.mxu0 0
        %1295 = vmatprep.subr.bf16.mxu0 0
        %1296 = vmatpush1.bf16.msra.mxu0 0
        %1297 = vmatprep.subr.bf16.mxu0 0
        %1298 = vmatpush1.bf16.msra.mxu0 0
        %1299 = vmatprep.subr.bf16.mxu0 0
        %1300 = vmatpush1.bf16.msra.mxu0 0
        %1301 = vmatprep.subr.bf16.mxu0 0
        %1302 = vmatpush1.bf16.msra.mxu0 0
        %1303 = vmatprep.subr.bf16.mxu0 0
        %1304 = vmatpush1.bf16.msra.mxu0 0
        %1305 = vmatprep.subr.bf16.mxu0 0
        %1306 = vmatpush1.bf16.msra.mxu0 0
        %1307 = vmatprep.mubr.bf16.mxu0 0
        %1308 = vmatmul.mubr.bf16.gmra.mrb[0].mxu0 %v1209
        %v1309 = vpop.f32.mrb[0].mxu0
        %v1310 = vadd.f32 0.0, %v1309
        %v1311 = vpop.f32.mrb[0].mxu0
        %v1312 = vpop.f32.mrb[0].mxu0
        %v1313 = vadd.f32 0.0, %v1312
        %v1314 = vpop.f32.mrb[0].mxu0
        %1315 = vdwg.mxu0
        %s1316 = scalar_lea.vmem [#allocation8], 64
        %v1317 = vld [vmem:[%s1316] sm:$0xf]
        %v1318 = vld [vmem:[%s1316 + $0x4] sm:$0xf]
        %v1319 = vld [vmem:[%s1316 + $0x8] sm:$0xf]
        %v1320 = vld [vmem:[%s1316 + $0xc] sm:$0xf]
        %v1321 = vld [vmem:[%s1316 + $0x10] sm:$0xf]
        %v1322 = vld [vmem:[%s1316 + $0x14] sm:$0xf]
        %v1323 = vld [vmem:[%s1316 + $0x18] sm:$0xf]
        %v1324 = vld [vmem:[%s1316 + $0x1c] sm:$0xf]
        %v1325 = vld [vmem:[%s1316 + $0x20] sm:$0xf]
        %v1326 = vld [vmem:[%s1316 + $0x24] sm:$0xf]
        %v1327 = vld [vmem:[%s1316 + $0x28] sm:$0xf]
        %v1328 = vld [vmem:[%s1316 + $0x2c] sm:$0xf]
        %v1329 = vld [vmem:[%s1316 + $0x30] sm:$0xf]
        %v1330 = vld [vmem:[%s1316 + $0x34] sm:$0xf]
        %v1331 = vld [vmem:[%s1316 + $0x38] sm:$0xf]
        %v1332 = vld [vmem:[%s1316 + $0x3c] sm:$0xf]
        %v1349 = vunpack.c.l.b16 %v1317
        %v1350 = vunpack.c.l.b16 %v1318
        %v1351 = vunpack.c.l.b16 %v1319
        %v1352 = vunpack.c.l.b16 %v1320
        %v1353 = vunpack.c.l.b16 %v1321
        %v1354 = vunpack.c.l.b16 %v1322
        %v1355 = vunpack.c.l.b16 %v1323
        %v1356 = vunpack.c.l.b16 %v1324
        %v1357 = vunpack.c.l.b16 %v1325
        %v1358 = vunpack.c.l.b16 %v1326
        %v1359 = vunpack.c.l.b16 %v1327
        %v1360 = vunpack.c.l.b16 %v1328
        %v1361 = vunpack.c.l.b16 %v1329
        %v1362 = vunpack.c.l.b16 %v1330
        %v1363 = vunpack.c.l.b16 %v1331
        %v1364 = vunpack.c.l.b16 %v1332
        %v1365 = vpack.c.b16 %v1350, %v1349
        %v1366 = vpack.c.b16 %v1352, %v1351
        %v1367 = vpack.c.b16 %v1354, %v1353
        %v1368 = vpack.c.b16 %v1356, %v1355
        %v1369 = vpack.c.b16 %v1358, %v1357
        %v1370 = vpack.c.b16 %v1360, %v1359
        %v1371 = vpack.c.b16 %v1362, %v1361
        %v1372 = vpack.c.b16 %v1364, %v1363
        %1381 = vmatprep.subr.bf16.mxu0 0
        %1382 = vmatpush1.bf16.msra.mxu0 %v1365
        %1383 = vmatprep.subr.bf16.mxu0 0
        %1384 = vmatpush1.bf16.msra.mxu0 %v1366
        %1385 = vmatprep.subr.bf16.mxu0 0
        %1386 = vmatpush1.bf16.msra.mxu0 %v1367
        %1387 = vmatprep.subr.bf16.mxu0 0
        %1388 = vmatpush1.bf16.msra.mxu0 %v1368
        %1389 = vmatprep.subr.bf16.mxu0 0
        %1390 = vmatpush1.bf16.msra.mxu0 %v1369
        %1391 = vmatprep.subr.bf16.mxu0 0
        %1392 = vmatpush1.bf16.msra.mxu0 %v1370
        %1393 = vmatprep.subr.bf16.mxu0 0
        %1394 = vmatpush1.bf16.msra.mxu0 %v1371
        %1395 = vmatprep.subr.bf16.mxu0 0
        %1396 = vmatpush1.bf16.msra.mxu0 %v1372
        %1397 = vmatprep.subr.bf16.mxu0 0
        %1398 = vmatpush1.bf16.msra.mxu0 0
        %1399 = vmatprep.subr.bf16.mxu0 0
        %1400 = vmatpush1.bf16.msra.mxu0 0
        %1401 = vmatprep.subr.bf16.mxu0 0
        %1402 = vmatpush1.bf16.msra.mxu0 0
        %1403 = vmatprep.subr.bf16.mxu0 0
        %1404 = vmatpush1.bf16.msra.mxu0 0
        %1405 = vmatprep.subr.bf16.mxu0 0
        %1406 = vmatpush1.bf16.msra.mxu0 0
        %1407 = vmatprep.subr.bf16.mxu0 0
        %1408 = vmatpush1.bf16.msra.mxu0 0
        %1409 = vmatprep.subr.bf16.mxu0 0
        %1410 = vmatpush1.bf16.msra.mxu0 0
        %1411 = vmatprep.subr.bf16.mxu0 0
        %1412 = vmatpush1.bf16.msra.mxu0 0
        %1413 = vmatprep.mubr.bf16.mxu0 0
        %1414 = vmatmul.mubr.bf16.gmra.mrb[0].mxu0 %v1209
        %v1415 = vpop.f32.mrb[0].mxu0
        %v1416 = vadd.f32 0.0, %v1415
        %v1417 = vpop.f32.mrb[0].mxu0
        %v1418 = vpop.f32.mrb[0].mxu0
        %v1419 = vadd.f32 0.0, %v1418
        %v1420 = vpop.f32.mrb[0].mxu0
        %1421 = vdwg.mxu0
        %s1422 = scalar_lea.vmem [#allocation8], 128
        %v1423 = vld [vmem:[%s1422] sm:$0xf]
        %v1424 = vld [vmem:[%s1422 + $0x4] sm:$0xf]
        %v1425 = vld [vmem:[%s1422 + $0x8] sm:$0xf]
        %v1426 = vld [vmem:[%s1422 + $0xc] sm:$0xf]
        %v1427 = vld [vmem:[%s1422 + $0x10] sm:$0xf]
        %v1428 = vld [vmem:[%s1422 + $0x14] sm:$0xf]
        %v1429 = vld [vmem:[%s1422 + $0x18] sm:$0xf]
        %v1430 = vld [vmem:[%s1422 + $0x1c] sm:$0xf]
        %v1431 = vld [vmem:[%s1422 + $0x20] sm:$0xf]
        %v1432 = vld [vmem:[%s1422 + $0x24] sm:$0xf]
        %v1433 = vld [vmem:[%s1422 + $0x28] sm:$0xf]
        %v1434 = vld [vmem:[%s1422 + $0x2c] sm:$0xf]
        %v1435 = vld [vmem:[%s1422 + $0x30] sm:$0xf]
        %v1436 = vld [vmem:[%s1422 + $0x34] sm:$0xf]
        %v1437 = vld [vmem:[%s1422 + $0x38] sm:$0xf]
        %v1438 = vld [vmem:[%s1422 + $0x3c] sm:$0xf]
        %v1455 = vunpack.c.l.b16 %v1423
        %v1456 = vunpack.c.l.b16 %v1424
        %v1457 = vunpack.c.l.b16 %v1425
        %v1458 = vunpack.c.l.b16 %v1426
        %v1459 = vunpack.c.l.b16 %v1427
        %v1460 = vunpack.c.l.b16 %v1428
        %v1461 = vunpack.c.l.b16 %v1429
        %v1462 = vunpack.c.l.b16 %v1430
        %v1463 = vunpack.c.l.b16 %v1431
        %v1464 = vunpack.c.l.b16 %v1432
        %v1465 = vunpack.c.l.b16 %v1433
        %v1466 = vunpack.c.l.b16 %v1434
        %v1467 = vunpack.c.l.b16 %v1435
        %v1468 = vunpack.c.l.b16 %v1436
        %v1469 = vunpack.c.l.b16 %v1437
        %v1470 = vunpack.c.l.b16 %v1438
        %v1471 = vpack.c.b16 %v1456, %v1455
        %v1472 = vpack.c.b16 %v1458, %v1457
        %v1473 = vpack.c.b16 %v1460, %v1459
        %v1474 = vpack.c.b16 %v1462, %v1461
        %v1475 = vpack.c.b16 %v1464, %v1463
        %v1476 = vpack.c.b16 %v1466, %v1465
        %v1477 = vpack.c.b16 %v1468, %v1467
        %v1478 = vpack.c.b16 %v1470, %v1469
        %1487 = vmatprep.subr.bf16.mxu0 0
        %1488 = vmatpush1.bf16.msra.mxu0 %v1471
        %1489 = vmatprep.subr.bf16.mxu0 0
        %1490 = vmatpush1.bf16.msra.mxu0 %v1472
        %1491 = vmatprep.subr.bf16.mxu0 0
        %1492 = vmatpush1.bf16.msra.mxu0 %v1473
        %1493 = vmatprep.subr.bf16.mxu0 0
        %1494 = vmatpush1.bf16.msra.mxu0 %v1474
        %1495 = vmatprep.subr.bf16.mxu0 0
        %1496 = vmatpush1.bf16.msra.mxu0 %v1475
        %1497 = vmatprep.subr.bf16.mxu0 0
        %1498 = vmatpush1.bf16.msra.mxu0 %v1476
        %1499 = vmatprep.subr.bf16.mxu0 0
        %1500 = vmatpush1.bf16.msra.mxu0 %v1477
        %1501 = vmatprep.subr.bf16.mxu0 0
        %1502 = vmatpush1.bf16.msra.mxu0 %v1478
        %1503 = vmatprep.subr.bf16.mxu0 0
        %1504 = vmatpush1.bf16.msra.mxu0 0
        %1505 = vmatprep.subr.bf16.mxu0 0
        %1506 = vmatpush1.bf16.msra.mxu0 0
        %1507 = vmatprep.subr.bf16.mxu0 0
        %1508 = vmatpush1.bf16.msra.mxu0 0
        %1509 = vmatprep.subr.bf16.mxu0 0
        %1510 = vmatpush1.bf16.msra.mxu0 0
        %1511 = vmatprep.subr.bf16.mxu0 0
        %1512 = vmatpush1.bf16.msra.mxu0 0
        %1513 = vmatprep.subr.bf16.mxu0 0
        %1514 = vmatpush1.bf16.msra.mxu0 0
        %1515 = vmatprep.subr.bf16.mxu0 0
        %1516 = vmatpush1.bf16.msra.mxu0 0
        %1517 = vmatprep.subr.bf16.mxu0 0
        %1518 = vmatpush1.bf16.msra.mxu0 0
        %1519 = vmatprep.mubr.bf16.mxu0 0
        %1520 = vmatmul.mubr.bf16.gmra.mrb[0].mxu0 %v1209
        %v1521 = vpop.f32.mrb[0].mxu0
        %v1522 = vadd.f32 0.0, %v1521
        %v1523 = vpop.f32.mrb[0].mxu0
        %v1524 = vpop.f32.mrb[0].mxu0
        %v1525 = vadd.f32 0.0, %v1524
        %v1526 = vpop.f32.mrb[0].mxu0
        %1527 = vdwg.mxu0
        %v1528 = vrot.slane %v1310, 7
        %v1529 = vrot.slane %v1313, 7
        %v1530 = vsel %vm702, %v1528, %v1529
        %v1531 = vsel %vm702, %v1529, %v1528
        %v1532 = vsel %vm707, %v1531, 0.0
        %v1533 = vsel %vm708, %v1530, 0.0
        %v1534 = vrot.slane %v1522, 1
        %v1535 = vrot.slane %v1525, 1
        %v1536 = vsel %vm715, %v1534, %v1535
        %v1537 = vsel %vm715, %v1535, %v1534
        %v1538 = vsel %vm720, %v1536, 0.0
        %v1539 = vsel %vm721, %v1537, 0.0
        %v1540 = vadd.f32 %v1532, %v1416
        %v1541 = vadd.f32 %v1533, %v1419
        %v1542 = vadd.f32 %v1540, %v1538
        %v1543 = vadd.f32 %v1541, %v1539
        %v1545 = vlaneseq
        %v1546 = vshrl.u32 %v1545, 7
        %v1547 = vsub.s32 0, %v1546
        %v1548 = vrot.slane %v1210, %v1547
        %v1550 = vadd.f32 %v1542, %v1548
        %v1551 = vadd.f32 %v1543, %v1548
        %v1552 = vpack.c.bf16 %v1551, %v1550
        %v1554 = vunpack.c.l.b16 %v1552
        %v1555 = vunpack.c.h.b16 %v1552
        %v1556 = vpack.c.b16 %v1554, %v1554
        %v1557 = vpack.c.b16 %v1555, %v1555
        %1560 = vst [vmem:[%s367] sm:$0xf] %v1556
        %1561 = vst [vmem:[%s367 + $0x4] sm:$0xf] %v1557
        %s1562 = sand.u32 %s208, 1
        %s1563 = scalar_lea.sflag [#allocation4], %s1562
        %s1564 = sand.u32 %s208, 1
        %s1565 = smul.addr %s1564, 8
        %s1566 = scalar_lea.vmem [#allocation10], %s1565
        // Predicated region
        $region69: #{tpu_custom_call.1} parent=51 // pred_check
          %p1567 = pneg %p218
        $region70: #{tpu_custom_call.1} parent=51 // pred_check_branch
          %1569 = sbr.rel (%p1567) target = $region72
        $region71: #{tpu_custom_call.1} parent=51 // pred_region
          %s1571 = ssub.s32 128, 128
          %1572 = vsyncadd %s1563, %s1571
          %s1573 = smul.addr %s27, 2
          %s1574 = smul.addr %s1573, 64
          %s1575 = scalar_lea.hbm %s8, %s1574
          %s1576 = sshll.u32 %s1566, 4
          %s1577 = int_to_ptr.vmem [resolvable:$true] %s1576
          %1582 = dma.vmem_to_hbm [thread:$0]  %s1577, 128, %s1575, %s1563, 64, 64, 4
        $region72: #{tpu_custom_call.1} parent=51 // pred_fallthru
          _
      $region52: #{tpu_custom_call.1} parent=5 // pred_fallthru
        _
      %p1583 = scmp.le.s32.totalorder 2, %s22
      // Predicated region
      $region73: #{tpu_custom_call.1} parent=5 // pred_check
        %p1584 = pneg %p1583
      $region74: #{tpu_custom_call.1} parent=5 // pred_check_branch
        %1586 = sbr.rel (%p1584) target = $region76
      $region75: #{tpu_custom_call.1} parent=5 // pred_region
        %s1587 = ssub.s32 %s22, 2
        // Predicated region
        $region77: #{tpu_custom_call.1} parent=75 // pred_check
          %p1588 = pneg %p224
        $region78: #{tpu_custom_call.1} parent=75 // pred_check_branch
          %1590 = sbr.rel (%p1588) target = $region80
        $region79: #{tpu_custom_call.1} parent=75 // pred_region
          %s1591 = sand.u32 %s209, 1
          %s1592 = scalar_lea.sflag [#allocation4], %s1591
          %s1593 = sand.u32 %s209, 1
          %s1594 = smul.addr %s1593, 8
          %s1595 = scalar_lea.vmem [#allocation10], %s1594
          %1596 = dma.done %s1592, 128
        $region80: #{tpu_custom_call.1} parent=75 // pred_fallthru
          _
      $region76: #{tpu_custom_call.1} parent=5 // pred_fallthru
        _
    $region6: #{tpu_custom_call.1} parent=1 // loop_footer
      %s26 = sadd.s32 1, %s22
    $region7: #{tpu_custom_call.1} parent=1 // loop_footer_branch
      %21 = sbr.rel target = $region3
    $region8: #{tpu_custom_call.1} parent=1 // loop_exit
      _
    %1597 = vsyncpa [#allocation3], 1
    %s1598 = scalar_lea.sflag [#allocation3], 1
    %1599 = vsyncpa %s1598, 1
    %1600 = vsyncpa [#allocation6], 1
    %1601 = vsyncpa [#allocation9], 1
    %1602 = vsyncpa [#allocation4], 1
    %s1603 = scalar_lea.sflag [#allocation4], 1
    %1604 = vsyncpa %s1603, 1

</llo_original>
